<compile_context>
chip_gen: v7x
topology: tpu7x:2x2x1
jax: 0.10.0
libtpu: 0.0.40
codegen_flags: <defaults>
</compile_context>

<pallas_src>
import jax
import jax.numpy as jnp
from jax import lax
from jax.experimental import pallas as pl
from jax.experimental.pallas import tpu as pltpu  # noqa: F401  (TPU backend)

N_EMBED = 32
N_HEADS = 4
HEAD_SIZE = N_EMBED // N_HEADS
FF_HIDDEN = 4 * N_EMBED
EPS = 1e-5
NEG_BIAS = -1e30   # additive mask value; safe in f32 with the subtract-max trick


def _layer_norm(x, gamma, beta):
    mean = jnp.mean(x, axis=-1, keepdims=True)
    var = jnp.mean((x - mean) ** 2, axis=-1, keepdims=True)
    return (x - mean) * lax.rsqrt(var + EPS) * gamma + beta


def decoder_block_kernel(x_ref, bias_ref, ln1_g_ref, ln1_b_ref, wqkv_ref,
                         wp_ref, bp_ref, ln2_g_ref, ln2_b_ref,
                         w1_ref, b1_ref, w2_ref, b2_ref, out_ref):
    # x_ref is the whole flattened batch: (M, C) with M = B*T.
    x = x_ref[...].astype(jnp.float32)

    # ---- LayerNorm 1 ----
    x1 = _layer_norm(x, ln1_g_ref[...], ln1_b_ref[...])                 # (M, C)

    # ---- Fused QKV projection: one (M, C) x (C, 3C) MXU push ----
    # (Per review: fused vs 3 separate dots is a wash at N=96<=128; the width-8
    #  per-head lane slices below are cheap static selects at this size.)
    qkv = jnp.dot(x1, wqkv_ref[...], preferred_element_type=jnp.float32)  # (M, 3C)
    C = N_EMBED
    scale = HEAD_SIZE ** -0.5
    q = qkv[:, :C] * scale            # fold 1/sqrt(hs) once into q
    k = qkv[:, C:2 * C]
    v = qkv[:, 2 * C:]

    bias = bias_ref[...]              # (M, M) block-diag causal additive bias
    wp = wp_ref[...]                  # (C, C)

    # Residual (= LN1 output, per reference) + projection bias; per-head
    # projected attention outputs are accumulated (no lane concatenate).
    x2 = x1 + bp_ref[...]
    for h in range(N_HEADS):          # static, unrolled (4 iterations)
        sl = slice(h * HEAD_SIZE, (h + 1) * HEAD_SIZE)
        qh = q[:, sl]                 # (M, hs)
        kh = k[:, sl]
        vh = v[:, sl]

        # Whole-batch scores: (M, hs) x (M, hs)^T -> (M, M); cross-batch and
        # future positions are killed by the additive bias.
        s = lax.dot_general(qh, kh, (((1,), (1,)), ((), ())),
                            preferred_element_type=jnp.float32) + bias
        m = jnp.max(s, axis=-1, keepdims=True)
        p = jnp.exp(s - m)                                   # masked -> exactly 0
        l = jnp.sum(p, axis=-1, keepdims=True)
        # Exact division (no approx reciprocal) -> matches the reference softmax.
        oh = jnp.dot(p, vh, preferred_element_type=jnp.float32) / l     # (M, hs)

        # Fuse output projection per head: (M, hs) @ (hs, C), accumulate.
        x2 = x2 + jnp.dot(oh, wp[sl, :], preferred_element_type=jnp.float32)

    # ---- LayerNorm 2 ----
    x3 = _layer_norm(x2, ln2_g_ref[...], ln2_b_ref[...])

    # ---- FeedForward + residual ----
    hdn = jnp.maximum(
        jnp.dot(x3, w1_ref[...], preferred_element_type=jnp.float32) + b1_ref[...],
        0.0)
    ff = jnp.dot(hdn, w2_ref[...], preferred_element_type=jnp.float32) + b2_ref[...]

    out_ref[...] = (x3 + ff).astype(out_ref.dtype)


def decoder_block(x, params):
    B, T, C = x.shape
    assert C == N_EMBED
    M = B * T

    # Block-diagonal causal additive bias over the flattened (B*T) rows:
    # allowed iff same batch element AND key position <= query position.
    r = jnp.arange(M, dtype=jnp.int32)
    same_b = (r[:, None] // T) == (r[None, :] // T)
    causal = (r[None, :] % T) <= (r[:, None] % T)
    bias = jnp.where(same_b & causal, 0.0, NEG_BIAS).astype(jnp.float32)  # (M, M)

    # Flatten in the wrapper (free XLA reshape) so the kernel sees a direct
    # lane-layout-friendly 2-D slab and needs no in-kernel relayout.
    x2d = x.reshape(M, C)

    # Single invocation, no grid: whole working set (< 100 KB) lives in VMEM,
    # every weight is DMA'd exactly once, zero per-step pipeline overhead.
    out2d = pl.pallas_call(
        decoder_block_kernel,
        out_shape=jax.ShapeDtypeStruct((M, C), x.dtype),
    )(x2d, bias, *params)

    return out2d.reshape(B, T, C)


def decoder_block_ref(x, params):
    """Pure-JAX reference for validation (exact softmax)."""
    (ln1_g, ln1_b, w_qkv, wp, bp, ln2_g, ln2_b, w1, b1, w2, b2) = params
    x = x.astype(jnp.float32)
    C = N_EMBED

    def ln(z, g, b):
        m = jnp.mean(z, axis=-1, keepdims=True)
        v = jnp.mean((z - m) ** 2, axis=-1, keepdims=True)
        return (z - m) * lax.rsqrt(v + EPS) * g + b

    x1 = ln(x, ln1_g[0], ln1_b[0])
    qkv = x1 @ w_qkv
    q, k, v = qkv[..., :C], qkv[..., C:2 * C], qkv[..., 2 * C:]
    T = x.shape[1]
    mask = jnp.tril(jnp.ones((T, T), dtype=bool))
    outs = []
    for h in range(N_HEADS):
        sl = slice(h * HEAD_SIZE, (h + 1) * HEAD_SIZE)
        s = (q[..., sl] @ jnp.swapaxes(k[..., sl], -1, -2)) * HEAD_SIZE ** (-0.5)
        s = jnp.where(mask, s, -jnp.inf)
        p = jax.nn.softmax(s, axis=-1)
        outs.append(p @ v[..., sl])
    attn = jnp.concatenate(outs, axis=-1)
    x2 = x1 + attn @ wp + bp[0]
    x3 = ln(x2, ln2_g[0], ln2_b[0])
    ff = jnp.maximum(x3 @ w1 + b1[0], 0.0) @ w2 + b2[0]
    return x3 + ff


def make_params(key):
    C, F = N_EMBED, FF_HIDDEN
    ks = jax.random.split(key, 12)
    sc_c = 1.0 / jnp.sqrt(C)
    sc_f = 1.0 / jnp.sqrt(F)
    # Per-head WQ/WK/WV packed column-wise into (C, C), then fused into (C, 3C).
    wq = jax.random.normal(ks[0], (C, C), jnp.float32) * sc_c
    wk = jax.random.normal(ks[1], (C, C), jnp.float32) * sc_c
    wv = jax.random.normal(ks[2], (C, C), jnp.float32) * sc_c
    w_qkv = jnp.concatenate([wq, wk, wv], axis=1)                  # (C, 3C)
    wp = jax.random.normal(ks[3], (C, C), jnp.float32) * sc_c
    bp = jax.random.normal(ks[4], (1, C), jnp.float32) * 0.01
    w1 = jax.random.normal(ks[5], (C, F), jnp.float32) * sc_c
    b1 = jax.random.normal(ks[6], (1, F), jnp.float32) * 0.01
    w2 = jax.random.normal(ks[7], (F, C), jnp.float32) * sc_f
    b2 = jax.random.normal(ks[8], (1, C), jnp.float32) * 0.01
    ln1_g = jnp.ones((1, C), jnp.float32) + 0.05 * jax.random.normal(ks[9], (1, C), jnp.float32)
    ln1_b = 0.05 * jax.random.normal(ks[10], (1, C), jnp.float32)
    ln2_g = jnp.ones((1, C), jnp.float32)
    ln2_b = jnp.zeros((1, C), jnp.float32)
    return (ln1_g, ln1_b, w_qkv, wp, bp, ln2_g, ln2_b, w1, b1, w2, b2)


if __name__ == "__main__":
    B, T = 8, 8          # batch=8, seq (context_size)=8, n_embed=32, 4 heads
    key = jax.random.PRNGKey(0)
    kx, kp = jax.random.split(key)
    x = jax.random.normal(kx, (B, T, N_EMBED), jnp.float32)
    params = make_params(kp)

    out = jax.block_until_ready(decoder_block(x, params))
    ref = jax.block_until_ready(decoder_block_ref(x, params))

    assert out.shape == (B, T, N_EMBED)
    # Exact-math kernel path: differences vs the reference come only from MXU
    # accumulation order, so a tight tolerance holds comfortably.
    assert jnp.allclose(out, ref, rtol=1e-3, atol=1e-3), "mismatch vs JAX reference"
    print("KERNEL_OK")
</pallas_src>

<mosaic_0001>
module attributes {stable_mosaic.version = 11 : i64} {
  func.func @decoder_block_kernel(%arg0: memref<64x32xf32, #tpu.memory_space<vmem>>, %arg1: memref<64x64xf32, #tpu.memory_space<vmem>>, %arg2: memref<1x32xf32, #tpu.memory_space<vmem>>, %arg3: memref<1x32xf32, #tpu.memory_space<vmem>>, %arg4: memref<32x96xf32, #tpu.memory_space<vmem>>, %arg5: memref<32x32xf32, #tpu.memory_space<vmem>>, %arg6: memref<1x32xf32, #tpu.memory_space<vmem>>, %arg7: memref<1x32xf32, #tpu.memory_space<vmem>>, %arg8: memref<1x32xf32, #tpu.memory_space<vmem>>, %arg9: memref<32x128xf32, #tpu.memory_space<vmem>>, %arg10: memref<1x128xf32, #tpu.memory_space<vmem>>, %arg11: memref<128x32xf32, #tpu.memory_space<vmem>>, %arg12: memref<1x32xf32, #tpu.memory_space<vmem>>, %arg13: memref<64x32xf32, #tpu.memory_space<vmem>>) attributes {dimension_semantics = [], scalar_prefetch = 0 : i64, scratch_operands = 0 : i64, tpu.core_type = #tpu.core_type<tc>} {
    %c0 = arith.constant 0 : index
    %c0_0 = arith.constant 0 : index
    %0 = vector.load %arg0[%c0, %c0_0] : memref<64x32xf32, #tpu.memory_space<vmem>>, vector<64x32xf32>
    %c0_1 = arith.constant 0 : index
    %c0_2 = arith.constant 0 : index
    %1 = vector.load %arg2[%c0_1, %c0_2] : memref<1x32xf32, #tpu.memory_space<vmem>>, vector<1x32xf32>
    %c0_3 = arith.constant 0 : index
    %c0_4 = arith.constant 0 : index
    %2 = vector.load %arg3[%c0_3, %c0_4] : memref<1x32xf32, #tpu.memory_space<vmem>>, vector<1x32xf32>
    %cst = arith.constant dense<0.000000e+00> : vector<64xf32>
    %3 = vector.multi_reduction <add>, %0, %cst [1] : vector<64x32xf32> to vector<64xf32>
    %4 = vector.shape_cast %3 : vector<64xf32> to vector<64x1xf32>
    %cst_5 = arith.constant 3.200000e+01 : f32
    %5 = vector.broadcast %cst_5 : f32 to vector<64x1xf32>
    %6 = arith.divf %4, %5 : vector<64x1xf32>
    %7 = vector.broadcast %6 : vector<64x1xf32> to vector<64x32xf32>
    %8 = arith.subf %0, %7 : vector<64x32xf32>
    %9 = arith.mulf %8, %8 : vector<64x32xf32>
    %cst_6 = arith.constant dense<0.000000e+00> : vector<64xf32>
    %10 = vector.multi_reduction <add>, %9, %cst_6 [1] : vector<64x32xf32> to vector<64xf32>
    %11 = vector.shape_cast %10 : vector<64xf32> to vector<64x1xf32>
    %cst_7 = arith.constant 3.200000e+01 : f32
    %12 = vector.broadcast %cst_7 : f32 to vector<64x1xf32>
    %13 = arith.divf %11, %12 : vector<64x1xf32>
    %14 = vector.broadcast %6 : vector<64x1xf32> to vector<64x32xf32>
    %15 = arith.subf %0, %14 : vector<64x32xf32>
    %cst_8 = arith.constant 9.99999974E-6 : f32
    %16 = vector.broadcast %cst_8 : f32 to vector<64x1xf32>
    %17 = arith.addf %13, %16 : vector<64x1xf32>
    %18 = math.rsqrt %17 : vector<64x1xf32>
    %19 = vector.broadcast %18 : vector<64x1xf32> to vector<64x32xf32>
    %20 = arith.mulf %15, %19 : vector<64x32xf32>
    %21 = vector.broadcast %1 : vector<1x32xf32> to vector<64x32xf32>
    %22 = arith.mulf %20, %21 : vector<64x32xf32>
    %23 = vector.broadcast %2 : vector<1x32xf32> to vector<64x32xf32>
    %24 = arith.addf %22, %23 : vector<64x32xf32>
    %c0_9 = arith.constant 0 : index
    %c0_10 = arith.constant 0 : index
    %25 = vector.load %arg4[%c0_9, %c0_10] : memref<32x96xf32, #tpu.memory_space<vmem>>, vector<32x96xf32>
    %cst_11 = arith.constant dense<0.000000e+00> : vector<64x96xf32>
    %26 = tpu.matmul %24, %25, %cst_11 {dimension_numbers = #tpu.dot_dimension_numbers<[1], [0], [0], [1], [0, 0, 1, 1], [], []>} : vector<64x32xf32>, vector<32x96xf32>, vector<64x96xf32> -> vector<64x96xf32>
    %27 = vector.extract_strided_slice %26 {offsets = [0, 0], sizes = [64, 32], strides = [1, 1]} : vector<64x96xf32> to vector<64x32xf32>
    %cst_12 = arith.constant 0.353553385 : f32
    %28 = vector.broadcast %cst_12 : f32 to vector<64x32xf32>
    %29 = arith.mulf %27, %28 : vector<64x32xf32>
    %30 = vector.extract_strided_slice %26 {offsets = [0, 32], sizes = [64, 32], strides = [1, 1]} : vector<64x96xf32> to vector<64x32xf32>
    %31 = vector.extract_strided_slice %26 {offsets = [0, 64], sizes = [64, 32], strides = [1, 1]} : vector<64x96xf32> to vector<64x32xf32>
    %c0_13 = arith.constant 0 : index
    %c0_14 = arith.constant 0 : index
    %32 = vector.load %arg1[%c0_13, %c0_14] : memref<64x64xf32, #tpu.memory_space<vmem>>, vector<64x64xf32>
    %c0_15 = arith.constant 0 : index
    %c0_16 = arith.constant 0 : index
    %33 = vector.load %arg5[%c0_15, %c0_16] : memref<32x32xf32, #tpu.memory_space<vmem>>, vector<32x32xf32>
    %c0_17 = arith.constant 0 : index
    %c0_18 = arith.constant 0 : index
    %34 = vector.load %arg6[%c0_17, %c0_18] : memref<1x32xf32, #tpu.memory_space<vmem>>, vector<1x32xf32>
    %35 = vector.broadcast %34 : vector<1x32xf32> to vector<64x32xf32>
    %36 = arith.addf %24, %35 : vector<64x32xf32>
    %37 = vector.extract_strided_slice %29 {offsets = [0, 0], sizes = [64, 8], strides = [1, 1]} : vector<64x32xf32> to vector<64x8xf32>
    %38 = vector.extract_strided_slice %30 {offsets = [0, 0], sizes = [64, 8], strides = [1, 1]} : vector<64x32xf32> to vector<64x8xf32>
    %39 = vector.extract_strided_slice %31 {offsets = [0, 0], sizes = [64, 8], strides = [1, 1]} : vector<64x32xf32> to vector<64x8xf32>
    %cst_19 = arith.constant dense<0.000000e+00> : vector<64x64xf32>
    %40 = tpu.matmul %37, %38, %cst_19 {dimension_numbers = #tpu.dot_dimension_numbers<[1], [1], [0], [0], [0, 0, 1, 0], [], []>} : vector<64x8xf32>, vector<64x8xf32>, vector<64x64xf32> -> vector<64x64xf32>
    %41 = arith.addf %40, %32 : vector<64x64xf32>
    %cst_20 = arith.constant dense<0xFF800000> : vector<64xf32>
    %42 = vector.multi_reduction <maximumf>, %41, %cst_20 [1] : vector<64x64xf32> to vector<64xf32>
    %43 = vector.shape_cast %42 : vector<64xf32> to vector<64x1xf32>
    %44 = vector.broadcast %43 : vector<64x1xf32> to vector<64x64xf32>
    %45 = arith.subf %41, %44 : vector<64x64xf32>
    %46 = math.exp %45 : vector<64x64xf32>
    %cst_21 = arith.constant dense<0.000000e+00> : vector<64xf32>
    %47 = vector.multi_reduction <add>, %46, %cst_21 [1] : vector<64x64xf32> to vector<64xf32>
    %48 = vector.shape_cast %47 : vector<64xf32> to vector<64x1xf32>
    %cst_22 = arith.constant dense<0.000000e+00> : vector<64x8xf32>
    %49 = tpu.matmul %46, %39, %cst_22 {dimension_numbers = #tpu.dot_dimension_numbers<[1], [0], [0], [1], [0, 0, 1, 1], [], []>} : vector<64x64xf32>, vector<64x8xf32>, vector<64x8xf32> -> vector<64x8xf32>
    %50 = vector.broadcast %48 : vector<64x1xf32> to vector<64x8xf32>
    %51 = arith.divf %49, %50 : vector<64x8xf32>
    %52 = vector.extract_strided_slice %33 {offsets = [0, 0], sizes = [8, 32], strides = [1, 1]} : vector<32x32xf32> to vector<8x32xf32>
    %cst_23 = arith.constant dense<0.000000e+00> : vector<64x32xf32>
    %53 = tpu.matmul %51, %52, %cst_23 {dimension_numbers = #tpu.dot_dimension_numbers<[1], [0], [0], [1], [0, 0, 1, 1], [], []>} : vector<64x8xf32>, vector<8x32xf32>, vector<64x32xf32> -> vector<64x32xf32>
    %54 = arith.addf %36, %53 : vector<64x32xf32>
    %55 = vector.extract_strided_slice %29 {offsets = [0, 8], sizes = [64, 8], strides = [1, 1]} : vector<64x32xf32> to vector<64x8xf32>
    %56 = vector.extract_strided_slice %30 {offsets = [0, 8], sizes = [64, 8], strides = [1, 1]} : vector<64x32xf32> to vector<64x8xf32>
    %57 = vector.extract_strided_slice %31 {offsets = [0, 8], sizes = [64, 8], strides = [1, 1]} : vector<64x32xf32> to vector<64x8xf32>
    %cst_24 = arith.constant dense<0.000000e+00> : vector<64x64xf32>
    %58 = tpu.matmul %55, %56, %cst_24 {dimension_numbers = #tpu.dot_dimension_numbers<[1], [1], [0], [0], [0, 0, 1, 0], [], []>} : vector<64x8xf32>, vector<64x8xf32>, vector<64x64xf32> -> vector<64x64xf32>
    %59 = arith.addf %58, %32 : vector<64x64xf32>
    %cst_25 = arith.constant dense<0xFF800000> : vector<64xf32>
    %60 = vector.multi_reduction <maximumf>, %59, %cst_25 [1] : vector<64x64xf32> to vector<64xf32>
    %61 = vector.shape_cast %60 : vector<64xf32> to vector<64x1xf32>
    %62 = vector.broadcast %61 : vector<64x1xf32> to vector<64x64xf32>
    %63 = arith.subf %59, %62 : vector<64x64xf32>
    %64 = math.exp %63 : vector<64x64xf32>
    %cst_26 = arith.constant dense<0.000000e+00> : vector<64xf32>
    %65 = vector.multi_reduction <add>, %64, %cst_26 [1] : vector<64x64xf32> to vector<64xf32>
    %66 = vector.shape_cast %65 : vector<64xf32> to vector<64x1xf32>
    %cst_27 = arith.constant dense<0.000000e+00> : vector<64x8xf32>
    %67 = tpu.matmul %64, %57, %cst_27 {dimension_numbers = #tpu.dot_dimension_numbers<[1], [0], [0], [1], [0, 0, 1, 1], [], []>} : vector<64x64xf32>, vector<64x8xf32>, vector<64x8xf32> -> vector<64x8xf32>
    %68 = vector.broadcast %66 : vector<64x1xf32> to vector<64x8xf32>
    %69 = arith.divf %67, %68 : vector<64x8xf32>
    %70 = vector.extract_strided_slice %33 {offsets = [8, 0], sizes = [8, 32], strides = [1, 1]} : vector<32x32xf32> to vector<8x32xf32>
    %cst_28 = arith.constant dense<0.000000e+00> : vector<64x32xf32>
    %71 = tpu.matmul %69, %70, %cst_28 {dimension_numbers = #tpu.dot_dimension_numbers<[1], [0], [0], [1], [0, 0, 1, 1], [], []>} : vector<64x8xf32>, vector<8x32xf32>, vector<64x32xf32> -> vector<64x32xf32>
    %72 = arith.addf %54, %71 : vector<64x32xf32>
    %73 = vector.extract_strided_slice %29 {offsets = [0, 16], sizes = [64, 8], strides = [1, 1]} : vector<64x32xf32> to vector<64x8xf32>
    %74 = vector.extract_strided_slice %30 {offsets = [0, 16], sizes = [64, 8], strides = [1, 1]} : vector<64x32xf32> to vector<64x8xf32>
    %75 = vector.extract_strided_slice %31 {offsets = [0, 16], sizes = [64, 8], strides = [1, 1]} : vector<64x32xf32> to vector<64x8xf32>
    %cst_29 = arith.constant dense<0.000000e+00> : vector<64x64xf32>
    %76 = tpu.matmul %73, %74, %cst_29 {dimension_numbers = #tpu.dot_dimension_numbers<[1], [1], [0], [0], [0, 0, 1, 0], [], []>} : vector<64x8xf32>, vector<64x8xf32>, vector<64x64xf32> -> vector<64x64xf32>
    %77 = arith.addf %76, %32 : vector<64x64xf32>
    %cst_30 = arith.constant dense<0xFF800000> : vector<64xf32>
    %78 = vector.multi_reduction <maximumf>, %77, %cst_30 [1] : vector<64x64xf32> to vector<64xf32>
    %79 = vector.shape_cast %78 : vector<64xf32> to vector<64x1xf32>
    %80 = vector.broadcast %79 : vector<64x1xf32> to vector<64x64xf32>
    %81 = arith.subf %77, %80 : vector<64x64xf32>
    %82 = math.exp %81 : vector<64x64xf32>
    %cst_31 = arith.constant dense<0.000000e+00> : vector<64xf32>
    %83 = vector.multi_reduction <add>, %82, %cst_31 [1] : vector<64x64xf32> to vector<64xf32>
    %84 = vector.shape_cast %83 : vector<64xf32> to vector<64x1xf32>
    %cst_32 = arith.constant dense<0.000000e+00> : vector<64x8xf32>
    %85 = tpu.matmul %82, %75, %cst_32 {dimension_numbers = #tpu.dot_dimension_numbers<[1], [0], [0], [1], [0, 0, 1, 1], [], []>} : vector<64x64xf32>, vector<64x8xf32>, vector<64x8xf32> -> vector<64x8xf32>
    %86 = vector.broadcast %84 : vector<64x1xf32> to vector<64x8xf32>
    %87 = arith.divf %85, %86 : vector<64x8xf32>
    %88 = vector.extract_strided_slice %33 {offsets = [16, 0], sizes = [8, 32], strides = [1, 1]} : vector<32x32xf32> to vector<8x32xf32>
    %cst_33 = arith.constant dense<0.000000e+00> : vector<64x32xf32>
    %89 = tpu.matmul %87, %88, %cst_33 {dimension_numbers = #tpu.dot_dimension_numbers<[1], [0], [0], [1], [0, 0, 1, 1], [], []>} : vector<64x8xf32>, vector<8x32xf32>, vector<64x32xf32> -> vector<64x32xf32>
    %90 = arith.addf %72, %89 : vector<64x32xf32>
    %91 = vector.extract_strided_slice %29 {offsets = [0, 24], sizes = [64, 8], strides = [1, 1]} : vector<64x32xf32> to vector<64x8xf32>
    %92 = vector.extract_strided_slice %30 {offsets = [0, 24], sizes = [64, 8], strides = [1, 1]} : vector<64x32xf32> to vector<64x8xf32>
    %93 = vector.extract_strided_slice %31 {offsets = [0, 24], sizes = [64, 8], strides = [1, 1]} : vector<64x32xf32> to vector<64x8xf32>
    %cst_34 = arith.constant dense<0.000000e+00> : vector<64x64xf32>
    %94 = tpu.matmul %91, %92, %cst_34 {dimension_numbers = #tpu.dot_dimension_numbers<[1], [1], [0], [0], [0, 0, 1, 0], [], []>} : vector<64x8xf32>, vector<64x8xf32>, vector<64x64xf32> -> vector<64x64xf32>
    %95 = arith.addf %94, %32 : vector<64x64xf32>
    %cst_35 = arith.constant dense<0xFF800000> : vector<64xf32>
    %96 = vector.multi_reduction <maximumf>, %95, %cst_35 [1] : vector<64x64xf32> to vector<64xf32>
    %97 = vector.shape_cast %96 : vector<64xf32> to vector<64x1xf32>
    %98 = vector.broadcast %97 : vector<64x1xf32> to vector<64x64xf32>
    %99 = arith.subf %95, %98 : vector<64x64xf32>
    %100 = math.exp %99 : vector<64x64xf32>
    %cst_36 = arith.constant dense<0.000000e+00> : vector<64xf32>
    %101 = vector.multi_reduction <add>, %100, %cst_36 [1] : vector<64x64xf32> to vector<64xf32>
    %102 = vector.shape_cast %101 : vector<64xf32> to vector<64x1xf32>
    %cst_37 = arith.constant dense<0.000000e+00> : vector<64x8xf32>
    %103 = tpu.matmul %100, %93, %cst_37 {dimension_numbers = #tpu.dot_dimension_numbers<[1], [0], [0], [1], [0, 0, 1, 1], [], []>} : vector<64x64xf32>, vector<64x8xf32>, vector<64x8xf32> -> vector<64x8xf32>
    %104 = vector.broadcast %102 : vector<64x1xf32> to vector<64x8xf32>
    %105 = arith.divf %103, %104 : vector<64x8xf32>
    %106 = vector.extract_strided_slice %33 {offsets = [24, 0], sizes = [8, 32], strides = [1, 1]} : vector<32x32xf32> to vector<8x32xf32>
    %cst_38 = arith.constant dense<0.000000e+00> : vector<64x32xf32>
    %107 = tpu.matmul %105, %106, %cst_38 {dimension_numbers = #tpu.dot_dimension_numbers<[1], [0], [0], [1], [0, 0, 1, 1], [], []>} : vector<64x8xf32>, vector<8x32xf32>, vector<64x32xf32> -> vector<64x32xf32>
    %108 = arith.addf %90, %107 : vector<64x32xf32>
    %c0_39 = arith.constant 0 : index
    %c0_40 = arith.constant 0 : index
    %109 = vector.load %arg7[%c0_39, %c0_40] : memref<1x32xf32, #tpu.memory_space<vmem>>, vector<1x32xf32>
    %c0_41 = arith.constant 0 : index
    %c0_42 = arith.constant 0 : index
    %110 = vector.load %arg8[%c0_41, %c0_42] : memref<1x32xf32, #tpu.memory_space<vmem>>, vector<1x32xf32>
    %cst_43 = arith.constant dense<0.000000e+00> : vector<64xf32>
    %111 = vector.multi_reduction <add>, %108, %cst_43 [1] : vector<64x32xf32> to vector<64xf32>
    %112 = vector.shape_cast %111 : vector<64xf32> to vector<64x1xf32>
    %cst_44 = arith.constant 3.200000e+01 : f32
    %113 = vector.broadcast %cst_44 : f32 to vector<64x1xf32>
    %114 = arith.divf %112, %113 : vector<64x1xf32>
    %115 = vector.broadcast %114 : vector<64x1xf32> to vector<64x32xf32>
    %116 = arith.subf %108, %115 : vector<64x32xf32>
    %117 = arith.mulf %116, %116 : vector<64x32xf32>
    %cst_45 = arith.constant dense<0.000000e+00> : vector<64xf32>
    %118 = vector.multi_reduction <add>, %117, %cst_45 [1] : vector<64x32xf32> to vector<64xf32>
    %119 = vector.shape_cast %118 : vector<64xf32> to vector<64x1xf32>
    %cst_46 = arith.constant 3.200000e+01 : f32
    %120 = vector.broadcast %cst_46 : f32 to vector<64x1xf32>
    %121 = arith.divf %119, %120 : vector<64x1xf32>
    %122 = vector.broadcast %114 : vector<64x1xf32> to vector<64x32xf32>
    %123 = arith.subf %108, %122 : vector<64x32xf32>
    %cst_47 = arith.constant 9.99999974E-6 : f32
    %124 = vector.broadcast %cst_47 : f32 to vector<64x1xf32>
    %125 = arith.addf %121, %124 : vector<64x1xf32>
    %126 = math.rsqrt %125 : vector<64x1xf32>
    %127 = vector.broadcast %126 : vector<64x1xf32> to vector<64x32xf32>
    %128 = arith.mulf %123, %127 : vector<64x32xf32>
    %129 = vector.broadcast %109 : vector<1x32xf32> to vector<64x32xf32>
    %130 = arith.mulf %128, %129 : vector<64x32xf32>
    %131 = vector.broadcast %110 : vector<1x32xf32> to vector<64x32xf32>
    %132 = arith.addf %130, %131 : vector<64x32xf32>
    %c0_48 = arith.constant 0 : index
    %c0_49 = arith.constant 0 : index
    %133 = vector.load %arg9[%c0_48, %c0_49] : memref<32x128xf32, #tpu.memory_space<vmem>>, vector<32x128xf32>
    %cst_50 = arith.constant dense<0.000000e+00> : vector<64x128xf32>
    %134 = tpu.matmul %132, %133, %cst_50 {dimension_numbers = #tpu.dot_dimension_numbers<[1], [0], [0], [1], [0, 0, 1, 1], [], []>} : vector<64x32xf32>, vector<32x128xf32>, vector<64x128xf32> -> vector<64x128xf32>
    %c0_51 = arith.constant 0 : index
    %c0_52 = arith.constant 0 : index
    %135 = vector.load %arg10[%c0_51, %c0_52] : memref<1x128xf32, #tpu.memory_space<vmem>>, vector<1x128xf32>
    %136 = vector.broadcast %135 : vector<1x128xf32> to vector<64x128xf32>
    %137 = arith.addf %134, %136 : vector<64x128xf32>
    %cst_53 = arith.constant 0.000000e+00 : f32
    %138 = vector.broadcast %cst_53 : f32 to vector<64x128xf32>
    %139 = arith.maximumf %137, %138 : vector<64x128xf32>
    %c0_54 = arith.constant 0 : index
    %c0_55 = arith.constant 0 : index
    %140 = vector.load %arg11[%c0_54, %c0_55] : memref<128x32xf32, #tpu.memory_space<vmem>>, vector<128x32xf32>
    %cst_56 = arith.constant dense<0.000000e+00> : vector<64x32xf32>
    %141 = tpu.matmul %139, %140, %cst_56 {dimension_numbers = #tpu.dot_dimension_numbers<[1], [0], [0], [1], [0, 0, 1, 1], [], []>} : vector<64x128xf32>, vector<128x32xf32>, vector<64x32xf32> -> vector<64x32xf32>
    %c0_57 = arith.constant 0 : index
    %c0_58 = arith.constant 0 : index
    %142 = vector.load %arg12[%c0_57, %c0_58] : memref<1x32xf32, #tpu.memory_space<vmem>>, vector<1x32xf32>
    %143 = vector.broadcast %142 : vector<1x32xf32> to vector<64x32xf32>
    %144 = arith.addf %141, %143 : vector<64x32xf32>
    %145 = arith.addf %132, %144 : vector<64x32xf32>
    %c0_59 = arith.constant 0 : index
    %c0_60 = arith.constant 0 : index
    %146 = vector.load %arg13[%c0_59, %c0_60] : memref<64x32xf32, #tpu.memory_space<vmem>>, vector<64x32xf32>
    tpu.vector_store %arg13[%c0_59, %c0_60], %145 {strides = array<i32>} : memref<64x32xf32, #tpu.memory_space<vmem>>, vector<64x32xf32>,
    return
  }
}

</mosaic_0001>

<llo_original>
// kernel: tpu_custom_call.1
$region0: #{tpu_custom_call.1}
  #allocation0 [shape = 'u32[]', space=smem, size = 0x4, offset = 0x4, fixed_abs, tag = 'smem constant byte address 0x4 - core index']
  #allocation1 [shape = 'u32[144,128]{1,0:T(1,128)}', space=vmem, size = 0x12000, scoped, tag = 'internal scratch']
  %s0 = inlined_call_operand.vmem [shape: f32[64,32], index: 0, kind: input, shape index: {}]
  %s1 = inlined_call_operand.vmem [shape: f32[64,64], index: 1, kind: input, shape index: {}]
  %s2 = inlined_call_operand.vmem [shape: f32[1,32], index: 2, kind: input, shape index: {}]
  %s3 = inlined_call_operand.vmem [shape: f32[1,32], index: 3, kind: input, shape index: {}]
  %s4 = inlined_call_operand.vmem [shape: f32[32,96], index: 4, kind: input, shape index: {}]
  %s5 = inlined_call_operand.vmem [shape: f32[32,32], index: 5, kind: input, shape index: {}]
  %s6 = inlined_call_operand.vmem [shape: f32[1,32], index: 6, kind: input, shape index: {}]
  %s7 = inlined_call_operand.vmem [shape: f32[1,32], index: 7, kind: input, shape index: {}]
  %s8 = inlined_call_operand.vmem [shape: f32[1,32], index: 8, kind: input, shape index: {}]
  %s9 = inlined_call_operand.vmem [shape: f32[32,128], index: 9, kind: input, shape index: {}]
  %s10 = inlined_call_operand.vmem [shape: f32[1,128], index: 10, kind: input, shape index: {}]
  %s11 = inlined_call_operand.vmem [shape: f32[128,32], index: 11, kind: input, shape index: {}]
  %s12 = inlined_call_operand.vmem [shape: f32[1,32], index: 12, kind: input, shape index: {}]
  %s13 = inlined_call_operand.vmem [shape: f32[64,32], index: 13, kind: output, shape index: {}]
  %s14 = sld [smem:[#allocation0]]
  $region62: #{tpu_custom_call.1} parent=0
    _
  %s16 = ssub.s32 1, %s14
  %s17 = scalar_select 0, %s16, %s14
  // Predicated region
  $region2: #{tpu_custom_call.1} parent=0 // pred_check
    _
  $region3: #{tpu_custom_call.1} parent=0 // pred_check_branch
    %19 = sbr.rel (0) target = $region5
  $region4: #{tpu_custom_call.1} parent=0 // pred_region
    _
  $region5: #{tpu_custom_call.1} parent=0 // pred_fallthru
    _
  // Predicated region
  $region6: #{tpu_custom_call.1} parent=0 // pred_check
    _
  $region7: #{tpu_custom_call.1} parent=0 // pred_check_branch
    %21 = sbr.rel (0) target = $region9
  $region8: #{tpu_custom_call.1} parent=0 // pred_region
    _
  $region9: #{tpu_custom_call.1} parent=0 // pred_fallthru
    _
  // Predicated region
  $region10: #{tpu_custom_call.1} parent=0 // pred_check
    _
  $region11: #{tpu_custom_call.1} parent=0 // pred_check_branch
    %23 = sbr.rel (0) target = $region13
  $region12: #{tpu_custom_call.1} parent=0 // pred_region
    _
  $region13: #{tpu_custom_call.1} parent=0 // pred_fallthru
    _
  // Predicated region
  $region14: #{tpu_custom_call.1} parent=0 // pred_check
    _
  $region15: #{tpu_custom_call.1} parent=0 // pred_check_branch
    %25 = sbr.rel (0) target = $region17
  $region16: #{tpu_custom_call.1} parent=0 // pred_region
    _
  $region17: #{tpu_custom_call.1} parent=0 // pred_fallthru
    _
  // Predicated region
  $region18: #{tpu_custom_call.1} parent=0 // pred_check
    _
  $region19: #{tpu_custom_call.1} parent=0 // pred_check_branch
    %27 = sbr.rel (0) target = $region21
  $region20: #{tpu_custom_call.1} parent=0 // pred_region
    _
  $region21: #{tpu_custom_call.1} parent=0 // pred_fallthru
    _
  // Predicated region
  $region22: #{tpu_custom_call.1} parent=0 // pred_check
    _
  $region23: #{tpu_custom_call.1} parent=0 // pred_check_branch
    %29 = sbr.rel (0) target = $region25
  $region24: #{tpu_custom_call.1} parent=0 // pred_region
    _
  $region25: #{tpu_custom_call.1} parent=0 // pred_fallthru
    _
  // Predicated region
  $region26: #{tpu_custom_call.1} parent=0 // pred_check
    _
  $region27: #{tpu_custom_call.1} parent=0 // pred_check_branch
    %31 = sbr.rel (0) target = $region29
  $region28: #{tpu_custom_call.1} parent=0 // pred_region
    _
  $region29: #{tpu_custom_call.1} parent=0 // pred_fallthru
    _
  // Predicated region
  $region30: #{tpu_custom_call.1} parent=0 // pred_check
    _
  $region31: #{tpu_custom_call.1} parent=0 // pred_check_branch
    %33 = sbr.rel (0) target = $region33
  $region32: #{tpu_custom_call.1} parent=0 // pred_region
    _
  $region33: #{tpu_custom_call.1} parent=0 // pred_fallthru
    _
  // Predicated region
  $region34: #{tpu_custom_call.1} parent=0 // pred_check
    _
  $region35: #{tpu_custom_call.1} parent=0 // pred_check_branch
    %35 = sbr.rel (0) target = $region37
  $region36: #{tpu_custom_call.1} parent=0 // pred_region
    _
  $region37: #{tpu_custom_call.1} parent=0 // pred_fallthru
    _
  // Predicated region
  $region38: #{tpu_custom_call.1} parent=0 // pred_check
    _
  $region39: #{tpu_custom_call.1} parent=0 // pred_check_branch
    %37 = sbr.rel (0) target = $region41
  $region40: #{tpu_custom_call.1} parent=0 // pred_region
    _
  $region41: #{tpu_custom_call.1} parent=0 // pred_fallthru
    _
  // Predicated region
  $region42: #{tpu_custom_call.1} parent=0 // pred_check
    _
  $region43: #{tpu_custom_call.1} parent=0 // pred_check_branch
    %39 = sbr.rel (0) target = $region45
  $region44: #{tpu_custom_call.1} parent=0 // pred_region
    _
  $region45: #{tpu_custom_call.1} parent=0 // pred_fallthru
    _
  // Predicated region
  $region46: #{tpu_custom_call.1} parent=0 // pred_check
    _
  $region47: #{tpu_custom_call.1} parent=0 // pred_check_branch
    %41 = sbr.rel (0) target = $region49
  $region48: #{tpu_custom_call.1} parent=0 // pred_region
    _
  $region49: #{tpu_custom_call.1} parent=0 // pred_fallthru
    _
  // Predicated region
  $region50: #{tpu_custom_call.1} parent=0 // pred_check
    _
  $region51: #{tpu_custom_call.1} parent=0 // pred_check_branch
    %43 = sbr.rel (0) target = $region53
  $region52: #{tpu_custom_call.1} parent=0 // pred_region
    _
  $region53: #{tpu_custom_call.1} parent=0 // pred_fallthru
    _
  %v44 = vld [vmem:[%s0] sm:$0xff]
  %v45 = vld [vmem:[%s0 + $0x8] sm:$0xff]
  %v46 = vld [vmem:[%s0 + $0x10] sm:$0xff]
  %v47 = vld [vmem:[%s0 + $0x18] sm:$0xff]
  %v48 = vld [vmem:[%s0 + $0x20] sm:$0xff]
  %v49 = vld [vmem:[%s0 + $0x28] sm:$0xff]
  %v50 = vld [vmem:[%s0 + $0x30] sm:$0xff]
  %v51 = vld [vmem:[%s0 + $0x38] sm:$0xff]
  %v52 = vld [vmem:[%s2] sm:$0x1]
  %v53 = vld [vmem:[%s3] sm:$0x1]
  %vm54 = vcmask 261120
  %v55 = vsel %vm54, %v44, 0.0
  %56 = vadd.xlane.f32.xlu0 %v55
  %v57 = vpop.xlane.xlu0 %56
  %v58 = vsel %vm54, %v45, 0.0
  %59 = vadd.xlane.f32.xlu0 %v58
  %v60 = vpop.xlane.xlu0 %59
  %v61 = vsel %vm54, %v46, 0.0
  %62 = vadd.xlane.f32.xlu0 %v61
  %v63 = vpop.xlane.xlu0 %62
  %v64 = vsel %vm54, %v47, 0.0
  %65 = vadd.xlane.f32.xlu0 %v64
  %v66 = vpop.xlane.xlu0 %65
  %v67 = vsel %vm54, %v48, 0.0
  %68 = vadd.xlane.f32.xlu0 %v67
  %v69 = vpop.xlane.xlu0 %68
  %v70 = vsel %vm54, %v49, 0.0
  %71 = vadd.xlane.f32.xlu0 %v70
  %v72 = vpop.xlane.xlu0 %71
  %v73 = vsel %vm54, %v50, 0.0
  %74 = vadd.xlane.f32.xlu0 %v73
  %v75 = vpop.xlane.xlu0 %74
  %v76 = vsel %vm54, %v51, 0.0
  %77 = vadd.xlane.f32.xlu0 %v76
  %v78 = vpop.xlane.xlu0 %77
  %v79 = vrcp.pop 32.0
  %v80 = vmul.f32 %v57, %v79
  %v81 = vmul.f32 %v60, %v79
  %v82 = vmul.f32 %v63, %v79
  %v83 = vmul.f32 %v66, %v79
  %v84 = vmul.f32 %v69, %v79
  %v85 = vmul.f32 %v72, %v79
  %v86 = vmul.f32 %v75, %v79
  %v87 = vmul.f32 %v78, %v79
  %v88 = vsub.f32 %v44, %v80
  %v89 = vsub.f32 %v45, %v81
  %v90 = vsub.f32 %v46, %v82
  %v91 = vsub.f32 %v47, %v83
  %v92 = vsub.f32 %v48, %v84
  %v93 = vsub.f32 %v49, %v85
  %v94 = vsub.f32 %v50, %v86
  %v95 = vsub.f32 %v51, %v87
  %v96 = vmul.f32 %v88, %v88
  %v97 = vmul.f32 %v89, %v89
  %v98 = vmul.f32 %v90, %v90
  %v99 = vmul.f32 %v91, %v91
  %v100 = vmul.f32 %v92, %v92
  %v101 = vmul.f32 %v93, %v93
  %v102 = vmul.f32 %v94, %v94
  %v103 = vmul.f32 %v95, %v95
  %v104 = vsel %vm54, %v96, 0.0
  %105 = vadd.xlane.f32.xlu0 %v104
  %v106 = vpop.xlane.xlu0 %105
  %v107 = vsel %vm54, %v97, 0.0
  %108 = vadd.xlane.f32.xlu0 %v107
  %v109 = vpop.xlane.xlu0 %108
  %v110 = vsel %vm54, %v98, 0.0
  %111 = vadd.xlane.f32.xlu0 %v110
  %v112 = vpop.xlane.xlu0 %111
  %v113 = vsel %vm54, %v99, 0.0
  %114 = vadd.xlane.f32.xlu0 %v113
  %v115 = vpop.xlane.xlu0 %114
  %v116 = vsel %vm54, %v100, 0.0
  %117 = vadd.xlane.f32.xlu0 %v116
  %v118 = vpop.xlane.xlu0 %117
  %v119 = vsel %vm54, %v101, 0.0
  %120 = vadd.xlane.f32.xlu0 %v119
  %v121 = vpop.xlane.xlu0 %120
  %v122 = vsel %vm54, %v102, 0.0
  %123 = vadd.xlane.f32.xlu0 %v122
  %v124 = vpop.xlane.xlu0 %123
  %v125 = vsel %vm54, %v103, 0.0
  %126 = vadd.xlane.f32.xlu0 %v125
  %v127 = vpop.xlane.xlu0 %126
  %v128 = vmul.f32 %v106, %v79
  %v129 = vmul.f32 %v109, %v79
  %v130 = vmul.f32 %v112, %v79
  %v131 = vmul.f32 %v115, %v79
  %v132 = vmul.f32 %v118, %v79
  %v133 = vmul.f32 %v121, %v79
  %v134 = vmul.f32 %v124, %v79
  %v135 = vmul.f32 %v127, %v79
  %v136 = vadd.f32 %v128, 1e-05
  %v137 = vadd.f32 %v129, 1e-05
  %v138 = vadd.f32 %v130, 1e-05
  %v139 = vadd.f32 %v131, 1e-05
  %v140 = vadd.f32 %v132, 1e-05
  %v141 = vadd.f32 %v133, 1e-05
  %v142 = vadd.f32 %v134, 1e-05
  %v143 = vadd.f32 %v135, 1e-05
  %v144 = vrsqrt.pop %v136
  %v145 = vrsqrt.pop %v137
  %v146 = vrsqrt.pop %v138
  %v147 = vrsqrt.pop %v139
  %v148 = vrsqrt.pop %v140
  %v149 = vrsqrt.pop %v141
  %v150 = vrsqrt.pop %v142
  %v151 = vrsqrt.pop %v143
  %v152 = vmul.f32 %v88, %v144
  %v153 = vmul.f32 %v89, %v145
  %v154 = vmul.f32 %v90, %v146
  %v155 = vmul.f32 %v91, %v147
  %v156 = vmul.f32 %v92, %v148
  %v157 = vmul.f32 %v93, %v149
  %v158 = vmul.f32 %v94, %v150
  %v159 = vmul.f32 %v95, %v151
  %v161 = vlaneseq
  %v162 = vshrl.u32 %v161, 7
  %v163 = vsub.s32 0, %v162
  %v164 = vrot.slane %v52, %v163
  %v166 = vmul.f32 %v152, %v164
  %v167 = vmul.f32 %v153, %v164
  %v168 = vmul.f32 %v154, %v164
  %v169 = vmul.f32 %v155, %v164
  %v170 = vmul.f32 %v156, %v164
  %v171 = vmul.f32 %v157, %v164
  %v172 = vmul.f32 %v158, %v164
  %v173 = vmul.f32 %v159, %v164
  %v175 = vlaneseq
  %v176 = vshrl.u32 %v175, 7
  %v177 = vsub.s32 0, %v176
  %v178 = vrot.slane %v53, %v177
  %v180 = vadd.f32 %v166, %v178
  %v181 = vadd.f32 %v167, %v178
  %v182 = vadd.f32 %v168, %v178
  %v183 = vadd.f32 %v169, %v178
  %v184 = vadd.f32 %v170, %v178
  %v185 = vadd.f32 %v171, %v178
  %v186 = vadd.f32 %v172, %v178
  %v187 = vadd.f32 %v173, %v178
  %v188 = vld [vmem:[%s4] sm:$0xff]
  %v189 = vld [vmem:[%s4 + $0x8] sm:$0xff]
  %v190 = vld [vmem:[%s4 + $0x10] sm:$0xff]
  %v191 = vld [vmem:[%s4 + $0x18] sm:$0xff]
  %v193 = vsel %vm54, %v180, 0
  %v196 = vsel %vm54, %v181, 0
  %v199 = vsel %vm54, %v182, 0
  %v202 = vsel %vm54, %v183, 0
  %v205 = vsel %vm54, %v184, 0
  %v208 = vsel %vm54, %v185, 0
  %v211 = vsel %vm54, %v186, 0
  %v214 = vsel %vm54, %v187, 0
  %216 = vmatprep.subr.mxu0 0.0
  %217 = vmatpush1.msra.mxu0 %v188
  %218 = vmatprep.subr.mxu0 0.0
  %219 = vmatpush1.msra.mxu0 %v189
  %220 = vmatprep.subr.mxu0 0.0
  %221 = vmatpush1.msra.mxu0 %v190
  %222 = vmatprep.subr.mxu0 0.0
  %223 = vmatpush1.msra.mxu0 %v191
  %224 = vmatprep.subr.mxu0 0.0
  %225 = vmatpush1.msra.mxu0 0.0
  %226 = vmatprep.subr.mxu0 0.0
  %227 = vmatpush1.msra.mxu0 0.0
  %228 = vmatprep.subr.mxu0 0.0
  %229 = vmatpush1.msra.mxu0 0.0
  %230 = vmatprep.subr.mxu0 0.0
  %231 = vmatpush1.msra.mxu0 0.0
  %232 = vmatprep.subr.mxu0 0.0
  %233 = vmatpush1.msra.mxu0 0.0
  %234 = vmatprep.subr.mxu0 0.0
  %235 = vmatpush1.msra.mxu0 0.0
  %236 = vmatprep.subr.mxu0 0.0
  %237 = vmatpush1.msra.mxu0 0.0
  %238 = vmatprep.subr.mxu0 0.0
  %239 = vmatpush1.msra.mxu0 0.0
  %240 = vmatprep.subr.mxu0 0.0
  %241 = vmatpush1.msra.mxu0 0.0
  %242 = vmatprep.subr.mxu0 0.0
  %243 = vmatpush1.msra.mxu0 0.0
  %244 = vmatprep.subr.mxu0 0.0
  %245 = vmatpush1.msra.mxu0 0.0
  %246 = vmatprep.subr.mxu0 0.0
  %247 = vmatpush1.msra.mxu0 0.0
  %248 = vmatprep.subr.mxu0 0.0
  %249 = vmatpush1.msra.mxu0 0.0
  %250 = vmatprep.subr.mxu0 0.0
  %251 = vmatpush1.msra.mxu0 0.0
  %252 = vmatprep.subr.mxu0 0.0
  %253 = vmatpush1.msra.mxu0 0.0
  %254 = vmatprep.subr.mxu0 0.0
  %255 = vmatpush1.msra.mxu0 0.0
  %256 = vmatprep.subr.mxu0 0.0
  %257 = vmatpush1.msra.mxu0 0.0
  %258 = vmatprep.subr.mxu0 0.0
  %259 = vmatpush1.msra.mxu0 0.0
  %260 = vmatprep.subr.mxu0 0.0
  %261 = vmatpush1.msra.mxu0 0.0
  %262 = vmatprep.subr.mxu0 0.0
  %263 = vmatpush1.msra.mxu0 0.0
  %264 = vmatprep.subr.mxu0 0.0
  %265 = vmatpush1.msra.mxu0 0.0
  %266 = vmatprep.subr.mxu0 0.0
  %267 = vmatpush1.msra.mxu0 0.0
  %268 = vmatprep.subr.mxu0 0.0
  %269 = vmatpush1.msra.mxu0 0.0
  %270 = vmatprep.subr.mxu0 0.0
  %271 = vmatpush1.msra.mxu0 0.0
  %272 = vmatprep.subr.mxu0 0.0
  %273 = vmatpush1.msra.mxu0 0.0
  %274 = vmatprep.subr.mxu0 0.0
  %275 = vmatpush1.msra.mxu0 0.0
  %276 = vmatprep.subr.mxu0 0.0
  %277 = vmatpush1.msra.mxu0 0.0
  %278 = vmatprep.subr.mxu0 0.0
  %279 = vmatpush1.msra.mxu0 0.0
  %280 = vmatprep.mubr.f32.mxu0 0.0
  %281 = vmatmul.mubr.f32.gmra.mrb[0].mxu0 %v193
  %v282 = vpop.f32.mrb[0].mxu0
  %v283 = vadd.f32 0.0, %v282
  %v284 = vpop.f32.mrb[0].mxu0
  %285 = vmatprep.mubr.f32.mxu0 0.0
  %286 = vmatmul.mubr.f32.gmra.mrb[0].mxu0 %v196
  %v287 = vpop.f32.mrb[0].mxu0
  %v288 = vadd.f32 0.0, %v287
  %v289 = vpop.f32.mrb[0].mxu0
  %290 = vmatprep.mubr.f32.mxu0 0.0
  %291 = vmatmul.mubr.f32.gmra.mrb[0].mxu0 %v199
  %v292 = vpop.f32.mrb[0].mxu0
  %v293 = vadd.f32 0.0, %v292
  %v294 = vpop.f32.mrb[0].mxu0
  %295 = vmatprep.mubr.f32.mxu0 0.0
  %296 = vmatmul.mubr.f32.gmra.mrb[0].mxu0 %v202
  %v297 = vpop.f32.mrb[0].mxu0
  %v298 = vadd.f32 0.0, %v297
  %v299 = vpop.f32.mrb[0].mxu0
  %300 = vmatprep.mubr.f32.mxu0 0.0
  %301 = vmatmul.mubr.f32.gmra.mrb[0].mxu0 %v205
  %v302 = vpop.f32.mrb[0].mxu0
  %v303 = vadd.f32 0.0, %v302
  %v304 = vpop.f32.mrb[0].mxu0
  %305 = vmatprep.mubr.f32.mxu0 0.0
  %306 = vmatmul.mubr.f32.gmra.mrb[0].mxu0 %v208
  %v307 = vpop.f32.mrb[0].mxu0
  %v308 = vadd.f32 0.0, %v307
  %v309 = vpop.f32.mrb[0].mxu0
  %310 = vmatprep.mubr.f32.mxu0 0.0
  %311 = vmatmul.mubr.f32.gmra.mrb[0].mxu0 %v211
  %v312 = vpop.f32.mrb[0].mxu0
  %v313 = vadd.f32 0.0, %v312
  %v314 = vpop.f32.mrb[0].mxu0
  %315 = vmatprep.mubr.f32.mxu0 0.0
  %316 = vmatmul.mubr.f32.gmra.mrb[0].mxu0 %v214
  %v317 = vpop.f32.mrb[0].mxu0
  %v318 = vadd.f32 0.0, %v317
  %v319 = vpop.f32.mrb[0].mxu0
  %320 = vdwg.mxu0
  %v321 = vmul.f32 %v283, 0.35355338
  %v322 = vmul.f32 %v288, 0.35355338
  %v323 = vmul.f32 %v293, 0.35355338
  %v324 = vmul.f32 %v298, 0.35355338
  %v325 = vmul.f32 %v303, 0.35355338
  %v326 = vmul.f32 %v308, 0.35355338
  %v327 = vmul.f32 %v313, 0.35355338
  %v328 = vmul.f32 %v318, 0.35355338
  %v329 = vld [vmem:[%s1] sm:$0xff]
  %v330 = vld [vmem:[%s1 + $0x8] sm:$0xff]
  %v331 = vld [vmem:[%s1 + $0x10] sm:$0xff]
  %v332 = vld [vmem:[%s1 + $0x18] sm:$0xff]
  %v333 = vld [vmem:[%s1 + $0x20] sm:$0xff]
  %v334 = vld [vmem:[%s1 + $0x28] sm:$0xff]
  %v335 = vld [vmem:[%s1 + $0x30] sm:$0xff]
  %v336 = vld [vmem:[%s1 + $0x38] sm:$0xff]
  %v337 = vld [vmem:[%s5] sm:$0xff]
  %v338 = vld [vmem:[%s5 + $0x8] sm:$0xff]
  %v339 = vld [vmem:[%s5 + $0x10] sm:$0xff]
  %v340 = vld [vmem:[%s5 + $0x18] sm:$0xff]
  %v341 = vld [vmem:[%s6] sm:$0x1]
  %v343 = vlaneseq
  %v344 = vshrl.u32 %v343, 7
  %v345 = vsub.s32 0, %v344
  %v346 = vrot.slane %v341, %v345
  %v348 = vadd.f32 %v180, %v346
  %v349 = vadd.f32 %v181, %v346
  %v350 = vadd.f32 %v182, %v346
  %v351 = vadd.f32 %v183, %v346
  %v352 = vadd.f32 %v184, %v346
  %v353 = vadd.f32 %v185, %v346
  %v354 = vadd.f32 %v186, %v346
  %v355 = vadd.f32 %v187, %v346
  %364 = vrot.lane.b32.xlu0 %v283, 96
  %v365 = vpop.permute.xlu0 %364
  %366 = vrot.lane.b32.xlu0 %v288, 96
  %v367 = vpop.permute.xlu0 %366
  %368 = vrot.lane.b32.xlu0 %v293, 96
  %v369 = vpop.permute.xlu0 %368
  %370 = vrot.lane.b32.xlu0 %v298, 96
  %v371 = vpop.permute.xlu0 %370
  %372 = vrot.lane.b32.xlu0 %v303, 96
  %v373 = vpop.permute.xlu0 %372
  %374 = vrot.lane.b32.xlu0 %v308, 96
  %v375 = vpop.permute.xlu0 %374
  %376 = vrot.lane.b32.xlu0 %v313, 96
  %v377 = vpop.permute.xlu0 %376
  %378 = vrot.lane.b32.xlu0 %v318, 96
  %v379 = vpop.permute.xlu0 %378
  %vm380 = vcmask 64512
  %v382 = vsel %vm380, %v321, 0
  %v385 = vsel %vm380, %v322, 0
  %v388 = vsel %vm380, %v323, 0
  %v391 = vsel %vm380, %v324, 0
  %v394 = vsel %vm380, %v325, 0
  %v397 = vsel %vm380, %v326, 0
  %v400 = vsel %vm380, %v327, 0
  %v403 = vsel %vm380, %v328, 0
  %v405 = vsel %vm380, %v365, 0
  %v407 = vsel %vm380, %v367, 0
  %v409 = vsel %vm380, %v369, 0
  %v411 = vsel %vm380, %v371, 0
  %v413 = vsel %vm380, %v373, 0
  %v415 = vsel %vm380, %v375, 0
  %v417 = vsel %vm380, %v377, 0
  %v419 = vsel %vm380, %v379, 0
  %421 = vmatprep.subr.mxu0 0.0
  %422 = vmatpush1.xpose.msra.mxu0 %v405
  %423 = vmatprep.subr.mxu0 0.0
  %424 = vmatpush1.xpose.msra.mxu0 %v407
  %425 = vmatprep.subr.mxu0 0.0
  %426 = vmatpush1.xpose.msra.mxu0 %v409
  %427 = vmatprep.subr.mxu0 0.0
  %428 = vmatpush1.xpose.msra.mxu0 %v411
  %429 = vmatprep.subr.mxu0 0.0
  %430 = vmatpush1.xpose.msra.mxu0 %v413
  %431 = vmatprep.subr.mxu0 0.0
  %432 = vmatpush1.xpose.msra.mxu0 %v415
  %433 = vmatprep.subr.mxu0 0.0
  %434 = vmatpush1.xpose.msra.mxu0 %v417
  %435 = vmatprep.subr.mxu0 0.0
  %436 = vmatpush1.xpose.msra.mxu0 %v419
  %437 = vmatprep.subr.mxu0 0.0
  %438 = vmatpush1.xpose.msra.mxu0 0.0
  %439 = vmatprep.subr.mxu0 0.0
  %440 = vmatpush1.xpose.msra.mxu0 0.0
  %441 = vmatprep.subr.mxu0 0.0
  %442 = vmatpush1.xpose.msra.mxu0 0.0
  %443 = vmatprep.subr.mxu0 0.0
  %444 = vmatpush1.xpose.msra.mxu0 0.0
  %445 = vmatprep.subr.mxu0 0.0
  %446 = vmatpush1.xpose.msra.mxu0 0.0
  %447 = vmatprep.subr.mxu0 0.0
  %448 = vmatpush1.xpose.msra.mxu0 0.0
  %449 = vmatprep.subr.mxu0 0.0
  %450 = vmatpush1.xpose.msra.mxu0 0.0
  %451 = vmatprep.subr.mxu0 0.0
  %452 = vmatpush1.xpose.msra.mxu0 0.0
  %453 = vmatprep.subr.mxu0 0.0
  %454 = vmatpush1.xpose.msra.mxu0 0.0
  %455 = vmatprep.subr.mxu0 0.0
  %456 = vmatpush1.xpose.msra.mxu0 0.0
  %457 = vmatprep.subr.mxu0 0.0
  %458 = vmatpush1.xpose.msra.mxu0 0.0
  %459 = vmatprep.subr.mxu0 0.0
  %460 = vmatpush1.xpose.msra.mxu0 0.0
  %461 = vmatprep.subr.mxu0 0.0
  %462 = vmatpush1.xpose.msra.mxu0 0.0
  %463 = vmatprep.subr.mxu0 0.0
  %464 = vmatpush1.xpose.msra.mxu0 0.0
  %465 = vmatprep.subr.mxu0 0.0
  %466 = vmatpush1.xpose.msra.mxu0 0.0
  %467 = vmatprep.subr.mxu0 0.0
  %468 = vmatpush1.xpose.msra.mxu0 0.0
  %469 = vmatprep.subr.mxu0 0.0
  %470 = vmatpush1.xpose.msra.mxu0 0.0
  %471 = vmatprep.subr.mxu0 0.0
  %472 = vmatpush1.xpose.msra.mxu0 0.0
  %473 = vmatprep.subr.mxu0 0.0
  %474 = vmatpush1.xpose.msra.mxu0 0.0
  %475 = vmatprep.subr.mxu0 0.0
  %476 = vmatpush1.xpose.msra.mxu0 0.0
  %477 = vmatprep.subr.mxu0 0.0
  %478 = vmatpush1.xpose.msra.mxu0 0.0
  %479 = vmatprep.subr.mxu0 0.0
  %480 = vmatpush1.xpose.msra.mxu0 0.0
  %481 = vmatprep.subr.mxu0 0.0
  %482 = vmatpush1.xpose.msra.mxu0 0.0
  %483 = vmatprep.subr.mxu0 0.0
  %484 = vmatpush1.xpose.msra.mxu0 0.0
  %485 = vmatprep.mubr.f32.mxu0 0.0
  %486 = vmatmul.mubr.f32.gmra.mrb[0].mxu0 %v382
  %v487 = vpop.f32.mrb[0].mxu0
  %v488 = vadd.f32 %v329, %v487
  %v489 = vpop.f32.mrb[0].mxu0
  %490 = vmatprep.mubr.f32.mxu0 0.0
  %491 = vmatmul.mubr.f32.gmra.mrb[0].mxu0 %v385
  %v492 = vpop.f32.mrb[0].mxu0
  %v493 = vadd.f32 %v330, %v492
  %v494 = vpop.f32.mrb[0].mxu0
  %495 = vmatprep.mubr.f32.mxu0 0.0
  %496 = vmatmul.mubr.f32.gmra.mrb[0].mxu0 %v388
  %v497 = vpop.f32.mrb[0].mxu0
  %v498 = vadd.f32 %v331, %v497
  %v499 = vpop.f32.mrb[0].mxu0
  %500 = vmatprep.mubr.f32.mxu0 0.0
  %501 = vmatmul.mubr.f32.gmra.mrb[0].mxu0 %v391
  %v502 = vpop.f32.mrb[0].mxu0
  %v503 = vadd.f32 %v332, %v502
  %v504 = vpop.f32.mrb[0].mxu0
  %505 = vmatprep.mubr.f32.mxu0 0.0
  %506 = vmatmul.mubr.f32.gmra.mrb[0].mxu0 %v394
  %v507 = vpop.f32.mrb[0].mxu0
  %v508 = vadd.f32 %v333, %v507
  %v509 = vpop.f32.mrb[0].mxu0
  %510 = vmatprep.mubr.f32.mxu0 0.0
  %511 = vmatmul.mubr.f32.gmra.mrb[0].mxu0 %v397
  %v512 = vpop.f32.mrb[0].mxu0
  %v513 = vadd.f32 %v334, %v512
  %v514 = vpop.f32.mrb[0].mxu0
  %515 = vmatprep.mubr.f32.mxu0 0.0
  %516 = vmatmul.mubr.f32.gmra.mrb[0].mxu0 %v400
  %v517 = vpop.f32.mrb[0].mxu0
  %v518 = vadd.f32 %v335, %v517
  %v519 = vpop.f32.mrb[0].mxu0
  %520 = vmatprep.mubr.f32.mxu0 0.0
  %521 = vmatmul.mubr.f32.gmra.mrb[0].mxu0 %v403
  %v522 = vpop.f32.mrb[0].mxu0
  %v523 = vadd.f32 %v336, %v522
  %v524 = vpop.f32.mrb[0].mxu0
  %525 = vdwg.mxu0
  %vm526 = vcmask 523264
  %v527 = vsel %vm526, %v488, -inf
  %528 = vmax.xlane.f32.xlu0 %v527
  %v529 = vpop.xlane.xlu0 %528
  %v530 = vsel %vm526, %v493, -inf
  %531 = vmax.xlane.f32.xlu0 %v530
  %v532 = vpop.xlane.xlu0 %531
  %v533 = vsel %vm526, %v498, -inf
  %534 = vmax.xlane.f32.xlu0 %v533
  %v535 = vpop.xlane.xlu0 %534
  %v536 = vsel %vm526, %v503, -inf
  %537 = vmax.xlane.f32.xlu0 %v536
  %v538 = vpop.xlane.xlu0 %537
  %v539 = vsel %vm526, %v508, -inf
  %540 = vmax.xlane.f32.xlu0 %v539
  %v541 = vpop.xlane.xlu0 %540
  %v542 = vsel %vm526, %v513, -inf
  %543 = vmax.xlane.f32.xlu0 %v542
  %v544 = vpop.xlane.xlu0 %543
  %v545 = vsel %vm526, %v518, -inf
  %546 = vmax.xlane.f32.xlu0 %v545
  %v547 = vpop.xlane.xlu0 %546
  %v548 = vsel %vm526, %v523, -inf
  %549 = vmax.xlane.f32.xlu0 %v548
  %v550 = vpop.xlane.xlu0 %549
  %v551 = vsub.f32 %v488, %v529
  %v552 = vsub.f32 %v493, %v532
  %v553 = vsub.f32 %v498, %v535
  %v554 = vsub.f32 %v503, %v538
  %v555 = vsub.f32 %v508, %v541
  %v556 = vsub.f32 %v513, %v544
  %v557 = vsub.f32 %v518, %v547
  %v558 = vsub.f32 %v523, %v550
  %v559 = vmul.f32 %v551, 1.442695
  %v560 = vpow.pop %v559
  %v561 = vmul.f32 %v552, 1.442695
  %v562 = vpow.pop %v561
  %v563 = vmul.f32 %v553, 1.442695
  %v564 = vpow.pop %v563
  %v565 = vmul.f32 %v554, 1.442695
  %v566 = vpow.pop %v565
  %v567 = vmul.f32 %v555, 1.442695
  %v568 = vpow.pop %v567
  %v569 = vmul.f32 %v556, 1.442695
  %v570 = vpow.pop %v569
  %v571 = vmul.f32 %v557, 1.442695
  %v572 = vpow.pop %v571
  %v573 = vmul.f32 %v558, 1.442695
  %v574 = vpow.pop %v573
  %v575 = vsel %vm526, %v560, 0.0
  %576 = vadd.xlane.f32.xlu0 %v575
  %v577 = vpop.xlane.xlu0 %576
  %v578 = vsel %vm526, %v562, 0.0
  %579 = vadd.xlane.f32.xlu0 %v578
  %v580 = vpop.xlane.xlu0 %579
  %v581 = vsel %vm526, %v564, 0.0
  %582 = vadd.xlane.f32.xlu0 %v581
  %v583 = vpop.xlane.xlu0 %582
  %v584 = vsel %vm526, %v566, 0.0
  %585 = vadd.xlane.f32.xlu0 %v584
  %v586 = vpop.xlane.xlu0 %585
  %v587 = vsel %vm526, %v568, 0.0
  %588 = vadd.xlane.f32.xlu0 %v587
  %v589 = vpop.xlane.xlu0 %588
  %v590 = vsel %vm526, %v570, 0.0
  %591 = vadd.xlane.f32.xlu0 %v590
  %v592 = vpop.xlane.xlu0 %591
  %v593 = vsel %vm526, %v572, 0.0
  %594 = vadd.xlane.f32.xlu0 %v593
  %v595 = vpop.xlane.xlu0 %594
  %v596 = vsel %vm526, %v574, 0.0
  %597 = vadd.xlane.f32.xlu0 %v596
  %v598 = vpop.xlane.xlu0 %597
  %599 = vrot.lane.b32.xlu0 %v283, 64
  %v600 = vpop.permute.xlu0 %599
  %601 = vrot.lane.b32.xlu0 %v288, 64
  %v602 = vpop.permute.xlu0 %601
  %603 = vrot.lane.b32.xlu0 %v293, 64
  %v604 = vpop.permute.xlu0 %603
  %605 = vrot.lane.b32.xlu0 %v298, 64
  %v606 = vpop.permute.xlu0 %605
  %607 = vrot.lane.b32.xlu0 %v303, 64
  %v608 = vpop.permute.xlu0 %607
  %609 = vrot.lane.b32.xlu0 %v308, 64
  %v610 = vpop.permute.xlu0 %609
  %611 = vrot.lane.b32.xlu0 %v313, 64
  %v612 = vpop.permute.xlu0 %611
  %613 = vrot.lane.b32.xlu0 %v318, 64
  %v614 = vpop.permute.xlu0 %613
  %v624 = vsel %vm526, %v560, 0
  %v627 = vsel %vm526, %v562, 0
  %v630 = vsel %vm526, %v564, 0
  %v633 = vsel %vm526, %v566, 0
  %v636 = vsel %vm526, %v568, 0
  %v639 = vsel %vm526, %v570, 0
  %v642 = vsel %vm526, %v572, 0
  %v645 = vsel %vm526, %v574, 0
  %647 = vmatprep.subr.mxu0 0.0
  %648 = vmatpush1.msra.mxu0 %v600
  %649 = vmatprep.subr.mxu0 0.0
  %650 = vmatpush1.msra.mxu0 %v602
  %651 = vmatprep.subr.mxu0 0.0
  %652 = vmatpush1.msra.mxu0 %v604
  %653 = vmatprep.subr.mxu0 0.0
  %654 = vmatpush1.msra.mxu0 %v606
  %655 = vmatprep.subr.mxu0 0.0
  %656 = vmatpush1.msra.mxu0 %v608
  %657 = vmatprep.subr.mxu0 0.0
  %658 = vmatpush1.msra.mxu0 %v610
  %659 = vmatprep.subr.mxu0 0.0
  %660 = vmatpush1.msra.mxu0 %v612
  %661 = vmatprep.subr.mxu0 0.0
  %662 = vmatpush1.msra.mxu0 %v614
  %663 = vmatprep.subr.mxu0 0.0
  %664 = vmatpush1.msra.mxu0 0.0
  %665 = vmatprep.subr.mxu0 0.0
  %666 = vmatpush1.msra.mxu0 0.0
  %667 = vmatprep.subr.mxu0 0.0
  %668 = vmatpush1.msra.mxu0 0.0
  %669 = vmatprep.subr.mxu0 0.0
  %670 = vmatpush1.msra.mxu0 0.0
  %671 = vmatprep.subr.mxu0 0.0
  %672 = vmatpush1.msra.mxu0 0.0
  %673 = vmatprep.subr.mxu0 0.0
  %674 = vmatpush1.msra.mxu0 0.0
  %675 = vmatprep.subr.mxu0 0.0
  %676 = vmatpush1.msra.mxu0 0.0
  %677 = vmatprep.subr.mxu0 0.0
  %678 = vmatpush1.msra.mxu0 0.0
  %679 = vmatprep.subr.mxu0 0.0
  %680 = vmatpush1.msra.mxu0 0.0
  %681 = vmatprep.subr.mxu0 0.0
  %682 = vmatpush1.msra.mxu0 0.0
  %683 = vmatprep.subr.mxu0 0.0
  %684 = vmatpush1.msra.mxu0 0.0
  %685 = vmatprep.subr.mxu0 0.0
  %686 = vmatpush1.msra.mxu0 0.0
  %687 = vmatprep.subr.mxu0 0.0
  %688 = vmatpush1.msra.mxu0 0.0
  %689 = vmatprep.subr.mxu0 0.0
  %690 = vmatpush1.msra.mxu0 0.0
  %691 = vmatprep.subr.mxu0 0.0
  %692 = vmatpush1.msra.mxu0 0.0
  %693 = vmatprep.subr.mxu0 0.0
  %694 = vmatpush1.msra.mxu0 0.0
  %695 = vmatprep.subr.mxu0 0.0
  %696 = vmatpush1.msra.mxu0 0.0
  %697 = vmatprep.subr.mxu0 0.0
  %698 = vmatpush1.msra.mxu0 0.0
  %699 = vmatprep.subr.mxu0 0.0
  %700 = vmatpush1.msra.mxu0 0.0
  %701 = vmatprep.subr.mxu0 0.0
  %702 = vmatpush1.msra.mxu0 0.0
  %703 = vmatprep.subr.mxu0 0.0
  %704 = vmatpush1.msra.mxu0 0.0
  %705 = vmatprep.subr.mxu0 0.0
  %706 = vmatpush1.msra.mxu0 0.0
  %707 = vmatprep.subr.mxu0 0.0
  %708 = vmatpush1.msra.mxu0 0.0
  %709 = vmatprep.subr.mxu0 0.0
  %710 = vmatpush1.msra.mxu0 0.0
  %711 = vmatprep.mubr.f32.mxu0 0.0
  %712 = vmatmul.mubr.f32.gmra.mrb[0].mxu0 %v624
  %v713 = vpop.f32.mrb[0].mxu0
  %v714 = vadd.f32 0.0, %v713
  %v715 = vpop.f32.mrb[0].mxu0
  %716 = vmatprep.mubr.f32.mxu0 0.0
  %717 = vmatmul.mubr.f32.gmra.mrb[0].mxu0 %v627
  %v718 = vpop.f32.mrb[0].mxu0
  %v719 = vadd.f32 0.0, %v718
  %v720 = vpop.f32.mrb[0].mxu0
  %721 = vmatprep.mubr.f32.mxu0 0.0
  %722 = vmatmul.mubr.f32.gmra.mrb[0].mxu0 %v630
  %v723 = vpop.f32.mrb[0].mxu0
  %v724 = vadd.f32 0.0, %v723
  %v725 = vpop.f32.mrb[0].mxu0
  %726 = vmatprep.mubr.f32.mxu0 0.0
  %727 = vmatmul.mubr.f32.gmra.mrb[0].mxu0 %v633
  %v728 = vpop.f32.mrb[0].mxu0
  %v729 = vadd.f32 0.0, %v728
  %v730 = vpop.f32.mrb[0].mxu0
  %731 = vmatprep.mubr.f32.mxu0 0.0
  %732 = vmatmul.mubr.f32.gmra.mrb[0].mxu0 %v636
  %v733 = vpop.f32.mrb[0].mxu0
  %v734 = vadd.f32 0.0, %v733
  %v735 = vpop.f32.mrb[0].mxu0
  %736 = vmatprep.mubr.f32.mxu0 0.0
  %737 = vmatmul.mubr.f32.gmra.mrb[0].mxu0 %v639
  %v738 = vpop.f32.mrb[0].mxu0
  %v739 = vadd.f32 0.0, %v738
  %v740 = vpop.f32.mrb[0].mxu0
  %741 = vmatprep.mubr.f32.mxu0 0.0
  %742 = vmatmul.mubr.f32.gmra.mrb[0].mxu0 %v642
  %v743 = vpop.f32.mrb[0].mxu0
  %v744 = vadd.f32 0.0, %v743
  %v745 = vpop.f32.mrb[0].mxu0
  %746 = vmatprep.mubr.f32.mxu0 0.0
  %747 = vmatmul.mubr.f32.gmra.mrb[0].mxu0 %v645
  %v748 = vpop.f32.mrb[0].mxu0
  %v749 = vadd.f32 0.0, %v748
  %v750 = vpop.f32.mrb[0].mxu0
  %751 = vdwg.mxu0
  %v752 = vrcp.pop %v577
  %v753 = vmul.f32 %v714, %v752
  %v754 = vrcp.pop %v580
  %v755 = vmul.f32 %v719, %v754
  %v756 = vrcp.pop %v583
  %v757 = vmul.f32 %v724, %v756
  %v758 = vrcp.pop %v586
  %v759 = vmul.f32 %v729, %v758
  %v760 = vrcp.pop %v589
  %v761 = vmul.f32 %v734, %v760
  %v762 = vrcp.pop %v592
  %v763 = vmul.f32 %v739, %v762
  %v764 = vrcp.pop %v595
  %v765 = vmul.f32 %v744, %v764
  %v766 = vrcp.pop %v598
  %v767 = vmul.f32 %v749, %v766
  %v769 = vsel %vm380, %v753, 0
  %v772 = vsel %vm380, %v755, 0
  %v775 = vsel %vm380, %v757, 0
  %v778 = vsel %vm380, %v759, 0
  %v781 = vsel %vm380, %v761, 0
  %v784 = vsel %vm380, %v763, 0
  %v787 = vsel %vm380, %v765, 0
  %v790 = vsel %vm380, %v767, 0
  %792 = vmatprep.subr.mxu0 0.0
  %793 = vmatpush1.msra.mxu0 %v337
  %794 = vmatprep.subr.mxu0 0.0
  %795 = vmatpush1.msra.mxu0 0.0
  %796 = vmatprep.subr.mxu0 0.0
  %797 = vmatpush1.msra.mxu0 0.0
  %798 = vmatprep.subr.mxu0 0.0
  %799 = vmatpush1.msra.mxu0 0.0
  %800 = vmatprep.subr.mxu0 0.0
  %801 = vmatpush1.msra.mxu0 0.0
  %802 = vmatprep.subr.mxu0 0.0
  %803 = vmatpush1.msra.mxu0 0.0
  %804 = vmatprep.subr.mxu0 0.0
  %805 = vmatpush1.msra.mxu0 0.0
  %806 = vmatprep.subr.mxu0 0.0
  %807 = vmatpush1.msra.mxu0 0.0
  %808 = vmatprep.subr.mxu0 0.0
  %809 = vmatpush1.msra.mxu0 0.0
  %810 = vmatprep.subr.mxu0 0.0
  %811 = vmatpush1.msra.mxu0 0.0
  %812 = vmatprep.subr.mxu0 0.0
  %813 = vmatpush1.msra.mxu0 0.0
  %814 = vmatprep.subr.mxu0 0.0
  %815 = vmatpush1.msra.mxu0 0.0
  %816 = vmatprep.subr.mxu0 0.0
  %817 = vmatpush1.msra.mxu0 0.0
  %818 = vmatprep.subr.mxu0 0.0
  %819 = vmatpush1.msra.mxu0 0.0
  %820 = vmatprep.subr.mxu0 0.0
  %821 = vmatpush1.msra.mxu0 0.0
  %822 = vmatprep.subr.mxu0 0.0
  %823 = vmatpush1.msra.mxu0 0.0
  %824 = vmatprep.subr.mxu0 0.0
  %825 = vmatpush1.msra.mxu0 0.0
  %826 = vmatprep.subr.mxu0 0.0
  %827 = vmatpush1.msra.mxu0 0.0
  %828 = vmatprep.subr.mxu0 0.0
  %829 = vmatpush1.msra.mxu0 0.0
  %830 = vmatprep.subr.mxu0 0.0
  %831 = vmatpush1.msra.mxu0 0.0
  %832 = vmatprep.subr.mxu0 0.0
  %833 = vmatpush1.msra.mxu0 0.0
  %834 = vmatprep.subr.mxu0 0.0
  %835 = vmatpush1.msra.mxu0 0.0
  %836 = vmatprep.subr.mxu0 0.0
  %837 = vmatpush1.msra.mxu0 0.0
  %838 = vmatprep.subr.mxu0 0.0
  %839 = vmatpush1.msra.mxu0 0.0
  %840 = vmatprep.subr.mxu0 0.0
  %841 = vmatpush1.msra.mxu0 0.0
  %842 = vmatprep.subr.mxu0 0.0
  %843 = vmatpush1.msra.mxu0 0.0
  %844 = vmatprep.subr.mxu0 0.0
  %845 = vmatpush1.msra.mxu0 0.0
  %846 = vmatprep.subr.mxu0 0.0
  %847 = vmatpush1.msra.mxu0 0.0
  %848 = vmatprep.subr.mxu0 0.0
  %849 = vmatpush1.msra.mxu0 0.0
  %850 = vmatprep.subr.mxu0 0.0
  %851 = vmatpush1.msra.mxu0 0.0
  %852 = vmatprep.subr.mxu0 0.0
  %853 = vmatpush1.msra.mxu0 0.0
  %854 = vmatprep.subr.mxu0 0.0
  %855 = vmatpush1.msra.mxu0 0.0
  %856 = vmatprep.mubr.f32.mxu0 0.0
  %857 = vmatmul.mubr.f32.gmra.mrb[0].mxu0 %v769
  %v858 = vpop.f32.mrb[0].mxu0
  %v859 = vadd.f32 0.0, %v858
  %v860 = vpop.f32.mrb[0].mxu0
  %861 = vmatprep.mubr.f32.mxu0 0.0
  %862 = vmatmul.mubr.f32.gmra.mrb[0].mxu0 %v772
  %v863 = vpop.f32.mrb[0].mxu0
  %v864 = vadd.f32 0.0, %v863
  %v865 = vpop.f32.mrb[0].mxu0
  %866 = vmatprep.mubr.f32.mxu0 0.0
  %867 = vmatmul.mubr.f32.gmra.mrb[0].mxu0 %v775
  %v868 = vpop.f32.mrb[0].mxu0
  %v869 = vadd.f32 0.0, %v868
  %v870 = vpop.f32.mrb[0].mxu0
  %871 = vmatprep.mubr.f32.mxu0 0.0
  %872 = vmatmul.mubr.f32.gmra.mrb[0].mxu0 %v778
  %v873 = vpop.f32.mrb[0].mxu0
  %v874 = vadd.f32 0.0, %v873
  %v875 = vpop.f32.mrb[0].mxu0
  %876 = vmatprep.mubr.f32.mxu0 0.0
  %877 = vmatmul.mubr.f32.gmra.mrb[0].mxu0 %v781
  %v878 = vpop.f32.mrb[0].mxu0
  %v879 = vadd.f32 0.0, %v878
  %v880 = vpop.f32.mrb[0].mxu0
  %881 = vmatprep.mubr.f32.mxu0 0.0
  %882 = vmatmul.mubr.f32.gmra.mrb[0].mxu0 %v784
  %v883 = vpop.f32.mrb[0].mxu0
  %v884 = vadd.f32 0.0, %v883
  %v885 = vpop.f32.mrb[0].mxu0
  %886 = vmatprep.mubr.f32.mxu0 0.0
  %887 = vmatmul.mubr.f32.gmra.mrb[0].mxu0 %v787
  %v888 = vpop.f32.mrb[0].mxu0
  %v889 = vadd.f32 0.0, %v888
  %v890 = vpop.f32.mrb[0].mxu0
  %891 = vmatprep.mubr.f32.mxu0 0.0
  %892 = vmatmul.mubr.f32.gmra.mrb[0].mxu0 %v790
  %v893 = vpop.f32.mrb[0].mxu0
  %v894 = vadd.f32 0.0, %v893
  %v895 = vpop.f32.mrb[0].mxu0
  %896 = vdwg.mxu0
  %v897 = vadd.f32 %v348, %v859
  %v898 = vadd.f32 %v349, %v864
  %v899 = vadd.f32 %v350, %v869
  %v900 = vadd.f32 %v351, %v874
  %v901 = vadd.f32 %v352, %v879
  %v902 = vadd.f32 %v353, %v884
  %v903 = vadd.f32 %v354, %v889
  %v904 = vadd.f32 %v355, %v894
  %905 = vrot.lane.b32.xlu0 %v321, 120
  %v906 = vpop.permute.xlu0 %905
  %907 = vrot.lane.b32.xlu0 %v322, 120
  %v908 = vpop.permute.xlu0 %907
  %909 = vrot.lane.b32.xlu0 %v323, 120
  %v910 = vpop.permute.xlu0 %909
  %911 = vrot.lane.b32.xlu0 %v324, 120
  %v912 = vpop.permute.xlu0 %911
  %913 = vrot.lane.b32.xlu0 %v325, 120
  %v914 = vpop.permute.xlu0 %913
  %915 = vrot.lane.b32.xlu0 %v326, 120
  %v916 = vpop.permute.xlu0 %915
  %917 = vrot.lane.b32.xlu0 %v327, 120
  %v918 = vpop.permute.xlu0 %917
  %919 = vrot.lane.b32.xlu0 %v328, 120
  %v920 = vpop.permute.xlu0 %919
  %921 = vrot.lane.b32.xlu0 %v283, 88
  %v922 = vpop.permute.xlu0 %921
  %923 = vrot.lane.b32.xlu0 %v288, 88
  %v924 = vpop.permute.xlu0 %923
  %925 = vrot.lane.b32.xlu0 %v293, 88
  %v926 = vpop.permute.xlu0 %925
  %927 = vrot.lane.b32.xlu0 %v298, 88
  %v928 = vpop.permute.xlu0 %927
  %929 = vrot.lane.b32.xlu0 %v303, 88
  %v930 = vpop.permute.xlu0 %929
  %931 = vrot.lane.b32.xlu0 %v308, 88
  %v932 = vpop.permute.xlu0 %931
  %933 = vrot.lane.b32.xlu0 %v313, 88
  %v934 = vpop.permute.xlu0 %933
  %935 = vrot.lane.b32.xlu0 %v318, 88
  %v936 = vpop.permute.xlu0 %935
  %v937 = vsel %vm380, %v906, 0
  %v939 = vsel %vm380, %v908, 0
  %v941 = vsel %vm380, %v910, 0
  %v943 = vsel %vm380, %v912, 0
  %v945 = vsel %vm380, %v914, 0
  %v947 = vsel %vm380, %v916, 0
  %v949 = vsel %vm380, %v918, 0
  %v951 = vsel %vm380, %v920, 0
  %v953 = vsel %vm380, %v922, 0
  %v955 = vsel %vm380, %v924, 0
  %v957 = vsel %vm380, %v926, 0
  %v959 = vsel %vm380, %v928, 0
  %v961 = vsel %vm380, %v930, 0
  %v963 = vsel %vm380, %v932, 0
  %v965 = vsel %vm380, %v934, 0
  %v967 = vsel %vm380, %v936, 0
  %969 = vmatprep.subr.mxu0 0.0
  %970 = vmatpush1.xpose.msra.mxu0 %v953
  %971 = vmatprep.subr.mxu0 0.0
  %972 = vmatpush1.xpose.msra.mxu0 %v955
  %973 = vmatprep.subr.mxu0 0.0
  %974 = vmatpush1.xpose.msra.mxu0 %v957
  %975 = vmatprep.subr.mxu0 0.0
  %976 = vmatpush1.xpose.msra.mxu0 %v959
  %977 = vmatprep.subr.mxu0 0.0
  %978 = vmatpush1.xpose.msra.mxu0 %v961
  %979 = vmatprep.subr.mxu0 0.0
  %980 = vmatpush1.xpose.msra.mxu0 %v963
  %981 = vmatprep.subr.mxu0 0.0
  %982 = vmatpush1.xpose.msra.mxu0 %v965
  %983 = vmatprep.subr.mxu0 0.0
  %984 = vmatpush1.xpose.msra.mxu0 %v967
  %985 = vmatprep.subr.mxu0 0.0
  %986 = vmatpush1.xpose.msra.mxu0 0.0
  %987 = vmatprep.subr.mxu0 0.0
  %988 = vmatpush1.xpose.msra.mxu0 0.0
  %989 = vmatprep.subr.mxu0 0.0
  %990 = vmatpush1.xpose.msra.mxu0 0.0
  %991 = vmatprep.subr.mxu0 0.0
  %992 = vmatpush1.xpose.msra.mxu0 0.0
  %993 = vmatprep.subr.mxu0 0.0
  %994 = vmatpush1.xpose.msra.mxu0 0.0
  %995 = vmatprep.subr.mxu0 0.0
  %996 = vmatpush1.xpose.msra.mxu0 0.0
  %997 = vmatprep.subr.mxu0 0.0
  %998 = vmatpush1.xpose.msra.mxu0 0.0
  %999 = vmatprep.subr.mxu0 0.0
  %1000 = vmatpush1.xpose.msra.mxu0 0.0
  %1001 = vmatprep.subr.mxu0 0.0
  %1002 = vmatpush1.xpose.msra.mxu0 0.0
  %1003 = vmatprep.subr.mxu0 0.0
  %1004 = vmatpush1.xpose.msra.mxu0 0.0
  %1005 = vmatprep.subr.mxu0 0.0
  %1006 = vmatpush1.xpose.msra.mxu0 0.0
  %1007 = vmatprep.subr.mxu0 0.0
  %1008 = vmatpush1.xpose.msra.mxu0 0.0
  %1009 = vmatprep.subr.mxu0 0.0
  %1010 = vmatpush1.xpose.msra.mxu0 0.0
  %1011 = vmatprep.subr.mxu0 0.0
  %1012 = vmatpush1.xpose.msra.mxu0 0.0
  %1013 = vmatprep.subr.mxu0 0.0
  %1014 = vmatpush1.xpose.msra.mxu0 0.0
  %1015 = vmatprep.subr.mxu0 0.0
  %1016 = vmatpush1.xpose.msra.mxu0 0.0
  %1017 = vmatprep.subr.mxu0 0.0
  %1018 = vmatpush1.xpose.msra.mxu0 0.0
  %1019 = vmatprep.subr.mxu0 0.0
  %1020 = vmatpush1.xpose.msra.mxu0 0.0
  %1021 = vmatprep.subr.mxu0 0.0
  %1022 = vmatpush1.xpose.msra.mxu0 0.0
  %1023 = vmatprep.subr.mxu0 0.0
  %1024 = vmatpush1.xpose.msra.mxu0 0.0
  %1025 = vmatprep.subr.mxu0 0.0
  %1026 = vmatpush1.xpose.msra.mxu0 0.0
  %1027 = vmatprep.subr.mxu0 0.0
  %1028 = vmatpush1.xpose.msra.mxu0 0.0
  %1029 = vmatprep.subr.mxu0 0.0
  %1030 = vmatpush1.xpose.msra.mxu0 0.0
  %1031 = vmatprep.subr.mxu0 0.0
  %1032 = vmatpush1.xpose.msra.mxu0 0.0
  %1033 = vmatprep.mubr.f32.mxu0 0.0
  %1034 = vmatmul.mubr.f32.gmra.mrb[0].mxu0 %v937
  %v1035 = vpop.f32.mrb[0].mxu0
  %v1036 = vadd.f32 %v329, %v1035
  %v1037 = vpop.f32.mrb[0].mxu0
  %1038 = vmatprep.mubr.f32.mxu0 0.0
  %1039 = vmatmul.mubr.f32.gmra.mrb[0].mxu0 %v939
  %v1040 = vpop.f32.mrb[0].mxu0
  %v1041 = vadd.f32 %v330, %v1040
  %v1042 = vpop.f32.mrb[0].mxu0
  %1043 = vmatprep.mubr.f32.mxu0 0.0
  %1044 = vmatmul.mubr.f32.gmra.mrb[0].mxu0 %v941
  %v1045 = vpop.f32.mrb[0].mxu0
  %v1046 = vadd.f32 %v331, %v1045
  %v1047 = vpop.f32.mrb[0].mxu0
  %1048 = vmatprep.mubr.f32.mxu0 0.0
  %1049 = vmatmul.mubr.f32.gmra.mrb[0].mxu0 %v943
  %v1050 = vpop.f32.mrb[0].mxu0
  %v1051 = vadd.f32 %v332, %v1050
  %v1052 = vpop.f32.mrb[0].mxu0
  %1053 = vmatprep.mubr.f32.mxu0 0.0
  %1054 = vmatmul.mubr.f32.gmra.mrb[0].mxu0 %v945
  %v1055 = vpop.f32.mrb[0].mxu0
  %v1056 = vadd.f32 %v333, %v1055
  %v1057 = vpop.f32.mrb[0].mxu0
  %1058 = vmatprep.mubr.f32.mxu0 0.0
  %1059 = vmatmul.mubr.f32.gmra.mrb[0].mxu0 %v947
  %v1060 = vpop.f32.mrb[0].mxu0
  %v1061 = vadd.f32 %v334, %v1060
  %v1062 = vpop.f32.mrb[0].mxu0
  %1063 = vmatprep.mubr.f32.mxu0 0.0
  %1064 = vmatmul.mubr.f32.gmra.mrb[0].mxu0 %v949
  %v1065 = vpop.f32.mrb[0].mxu0
  %v1066 = vadd.f32 %v335, %v1065
  %v1067 = vpop.f32.mrb[0].mxu0
  %1068 = vmatprep.mubr.f32.mxu0 0.0
  %1069 = vmatmul.mubr.f32.gmra.mrb[0].mxu0 %v951
  %v1070 = vpop.f32.mrb[0].mxu0
  %v1071 = vadd.f32 %v336, %v1070
  %v1072 = vpop.f32.mrb[0].mxu0
  %1073 = vdwg.mxu0
  %v1074 = vsel %vm526, %v1036, -inf
  %1075 = vmax.xlane.f32.xlu0 %v1074
  %v1076 = vpop.xlane.xlu0 %1075
  %v1077 = vsel %vm526, %v1041, -inf
  %1078 = vmax.xlane.f32.xlu0 %v1077
  %v1079 = vpop.xlane.xlu0 %1078
  %v1080 = vsel %vm526, %v1046, -inf
  %1081 = vmax.xlane.f32.xlu0 %v1080
  %v1082 = vpop.xlane.xlu0 %1081
  %v1083 = vsel %vm526, %v1051, -inf
  %1084 = vmax.xlane.f32.xlu0 %v1083
  %v1085 = vpop.xlane.xlu0 %1084
  %v1086 = vsel %vm526, %v1056, -inf
  %1087 = vmax.xlane.f32.xlu0 %v1086
  %v1088 = vpop.xlane.xlu0 %1087
  %v1089 = vsel %vm526, %v1061, -inf
  %1090 = vmax.xlane.f32.xlu0 %v1089
  %v1091 = vpop.xlane.xlu0 %1090
  %v1092 = vsel %vm526, %v1066, -inf
  %1093 = vmax.xlane.f32.xlu0 %v1092
  %v1094 = vpop.xlane.xlu0 %1093
  %v1095 = vsel %vm526, %v1071, -inf
  %1096 = vmax.xlane.f32.xlu0 %v1095
  %v1097 = vpop.xlane.xlu0 %1096
  %v1098 = vsub.f32 %v1036, %v1076
  %v1099 = vsub.f32 %v1041, %v1079
  %v1100 = vsub.f32 %v1046, %v1082
  %v1101 = vsub.f32 %v1051, %v1085
  %v1102 = vsub.f32 %v1056, %v1088
  %v1103 = vsub.f32 %v1061, %v1091
  %v1104 = vsub.f32 %v1066, %v1094
  %v1105 = vsub.f32 %v1071, %v1097
  %v1106 = vmul.f32 %v1098, 1.442695
  %v1107 = vpow.pop %v1106
  %v1108 = vmul.f32 %v1099, 1.442695
  %v1109 = vpow.pop %v1108
  %v1110 = vmul.f32 %v1100, 1.442695
  %v1111 = vpow.pop %v1110
  %v1112 = vmul.f32 %v1101, 1.442695
  %v1113 = vpow.pop %v1112
  %v1114 = vmul.f32 %v1102, 1.442695
  %v1115 = vpow.pop %v1114
  %v1116 = vmul.f32 %v1103, 1.442695
  %v1117 = vpow.pop %v1116
  %v1118 = vmul.f32 %v1104, 1.442695
  %v1119 = vpow.pop %v1118
  %v1120 = vmul.f32 %v1105, 1.442695
  %v1121 = vpow.pop %v1120
  %v1122 = vsel %vm526, %v1107, 0.0
  %1123 = vadd.xlane.f32.xlu0 %v1122
  %v1124 = vpop.xlane.xlu0 %1123
  %v1125 = vsel %vm526, %v1109, 0.0
  %1126 = vadd.xlane.f32.xlu0 %v1125
  %v1127 = vpop.xlane.xlu0 %1126
  %v1128 = vsel %vm526, %v1111, 0.0
  %1129 = vadd.xlane.f32.xlu0 %v1128
  %v1130 = vpop.xlane.xlu0 %1129
  %v1131 = vsel %vm526, %v1113, 0.0
  %1132 = vadd.xlane.f32.xlu0 %v1131
  %v1133 = vpop.xlane.xlu0 %1132
  %v1134 = vsel %vm526, %v1115, 0.0
  %1135 = vadd.xlane.f32.xlu0 %v1134
  %v1136 = vpop.xlane.xlu0 %1135
  %v1137 = vsel %vm526, %v1117, 0.0
  %1138 = vadd.xlane.f32.xlu0 %v1137
  %v1139 = vpop.xlane.xlu0 %1138
  %v1140 = vsel %vm526, %v1119, 0.0
  %1141 = vadd.xlane.f32.xlu0 %v1140
  %v1142 = vpop.xlane.xlu0 %1141
  %v1143 = vsel %vm526, %v1121, 0.0
  %1144 = vadd.xlane.f32.xlu0 %v1143
  %v1145 = vpop.xlane.xlu0 %1144
  %1146 = vrot.lane.b32.xlu0 %v283, 56
  %v1147 = vpop.permute.xlu0 %1146
  %1148 = vrot.lane.b32.xlu0 %v288, 56
  %v1149 = vpop.permute.xlu0 %1148
  %1150 = vrot.lane.b32.xlu0 %v293, 56
  %v1151 = vpop.permute.xlu0 %1150
  %1152 = vrot.lane.b32.xlu0 %v298, 56
  %v1153 = vpop.permute.xlu0 %1152
  %1154 = vrot.lane.b32.xlu0 %v303, 56
  %v1155 = vpop.permute.xlu0 %1154
  %1156 = vrot.lane.b32.xlu0 %v308, 56
  %v1157 = vpop.permute.xlu0 %1156
  %1158 = vrot.lane.b32.xlu0 %v313, 56
  %v1159 = vpop.permute.xlu0 %1158
  %1160 = vrot.lane.b32.xlu0 %v318, 56
  %v1161 = vpop.permute.xlu0 %1160
  %v1171 = vsel %vm526, %v1107, 0
  %v1174 = vsel %vm526, %v1109, 0
  %v1177 = vsel %vm526, %v1111, 0
  %v1180 = vsel %vm526, %v1113, 0
  %v1183 = vsel %vm526, %v1115, 0
  %v1186 = vsel %vm526, %v1117, 0
  %v1189 = vsel %vm526, %v1119, 0
  %v1192 = vsel %vm526, %v1121, 0
  %1194 = vmatprep.subr.mxu0 0.0
  %1195 = vmatpush1.msra.mxu0 %v1147
  %1196 = vmatprep.subr.mxu0 0.0
  %1197 = vmatpush1.msra.mxu0 %v1149
  %1198 = vmatprep.subr.mxu0 0.0
  %1199 = vmatpush1.msra.mxu0 %v1151
  %1200 = vmatprep.subr.mxu0 0.0
  %1201 = vmatpush1.msra.mxu0 %v1153
  %1202 = vmatprep.subr.mxu0 0.0
  %1203 = vmatpush1.msra.mxu0 %v1155
  %1204 = vmatprep.subr.mxu0 0.0
  %1205 = vmatpush1.msra.mxu0 %v1157
  %1206 = vmatprep.subr.mxu0 0.0
  %1207 = vmatpush1.msra.mxu0 %v1159
  %1208 = vmatprep.subr.mxu0 0.0
  %1209 = vmatpush1.msra.mxu0 %v1161
  %1210 = vmatprep.subr.mxu0 0.0
  %1211 = vmatpush1.msra.mxu0 0.0
  %1212 = vmatprep.subr.mxu0 0.0
  %1213 = vmatpush1.msra.mxu0 0.0
  %1214 = vmatprep.subr.mxu0 0.0
  %1215 = vmatpush1.msra.mxu0 0.0
  %1216 = vmatprep.subr.mxu0 0.0
  %1217 = vmatpush1.msra.mxu0 0.0
  %1218 = vmatprep.subr.mxu0 0.0
  %1219 = vmatpush1.msra.mxu0 0.0
  %1220 = vmatprep.subr.mxu0 0.0
  %1221 = vmatpush1.msra.mxu0 0.0
  %1222 = vmatprep.subr.mxu0 0.0
  %1223 = vmatpush1.msra.mxu0 0.0
  %1224 = vmatprep.subr.mxu0 0.0
  %1225 = vmatpush1.msra.mxu0 0.0
  %1226 = vmatprep.subr.mxu0 0.0
  %1227 = vmatpush1.msra.mxu0 0.0
  %1228 = vmatprep.subr.mxu0 0.0
  %1229 = vmatpush1.msra.mxu0 0.0
  %1230 = vmatprep.subr.mxu0 0.0
  %1231 = vmatpush1.msra.mxu0 0.0
  %1232 = vmatprep.subr.mxu0 0.0
  %1233 = vmatpush1.msra.mxu0 0.0
  %1234 = vmatprep.subr.mxu0 0.0
  %1235 = vmatpush1.msra.mxu0 0.0
  %1236 = vmatprep.subr.mxu0 0.0
  %1237 = vmatpush1.msra.mxu0 0.0
  %1238 = vmatprep.subr.mxu0 0.0
  %1239 = vmatpush1.msra.mxu0 0.0
  %1240 = vmatprep.subr.mxu0 0.0
  %1241 = vmatpush1.msra.mxu0 0.0
  %1242 = vmatprep.subr.mxu0 0.0
  %1243 = vmatpush1.msra.mxu0 0.0
  %1244 = vmatprep.subr.mxu0 0.0
  %1245 = vmatpush1.msra.mxu0 0.0
  %1246 = vmatprep.subr.mxu0 0.0
  %1247 = vmatpush1.msra.mxu0 0.0
  %1248 = vmatprep.subr.mxu0 0.0
  %1249 = vmatpush1.msra.mxu0 0.0
  %1250 = vmatprep.subr.mxu0 0.0
  %1251 = vmatpush1.msra.mxu0 0.0
  %1252 = vmatprep.subr.mxu0 0.0
  %1253 = vmatpush1.msra.mxu0 0.0
  %1254 = vmatprep.subr.mxu0 0.0
  %1255 = vmatpush1.msra.mxu0 0.0
  %1256 = vmatprep.subr.mxu0 0.0
  %1257 = vmatpush1.msra.mxu0 0.0
  %1258 = vmatprep.mubr.f32.mxu0 0.0
  %1259 = vmatmul.mubr.f32.gmra.mrb[0].mxu0 %v1171
  %v1260 = vpop.f32.mrb[0].mxu0
  %v1261 = vadd.f32 0.0, %v1260
  %v1262 = vpop.f32.mrb[0].mxu0
  %1263 = vmatprep.mubr.f32.mxu0 0.0
  %1264 = vmatmul.mubr.f32.gmra.mrb[0].mxu0 %v1174
  %v1265 = vpop.f32.mrb[0].mxu0
  %v1266 = vadd.f32 0.0, %v1265
  %v1267 = vpop.f32.mrb[0].mxu0
  %1268 = vmatprep.mubr.f32.mxu0 0.0
  %1269 = vmatmul.mubr.f32.gmra.mrb[0].mxu0 %v1177
  %v1270 = vpop.f32.mrb[0].mxu0
  %v1271 = vadd.f32 0.0, %v1270
  %v1272 = vpop.f32.mrb[0].mxu0
  %1273 = vmatprep.mubr.f32.mxu0 0.0
  %1274 = vmatmul.mubr.f32.gmra.mrb[0].mxu0 %v1180
  %v1275 = vpop.f32.mrb[0].mxu0
  %v1276 = vadd.f32 0.0, %v1275
  %v1277 = vpop.f32.mrb[0].mxu0
  %1278 = vmatprep.mubr.f32.mxu0 0.0
  %1279 = vmatmul.mubr.f32.gmra.mrb[0].mxu0 %v1183
  %v1280 = vpop.f32.mrb[0].mxu0
  %v1281 = vadd.f32 0.0, %v1280
  %v1282 = vpop.f32.mrb[0].mxu0
  %1283 = vmatprep.mubr.f32.mxu0 0.0
  %1284 = vmatmul.mubr.f32.gmra.mrb[0].mxu0 %v1186
  %v1285 = vpop.f32.mrb[0].mxu0
  %v1286 = vadd.f32 0.0, %v1285
  %v1287 = vpop.f32.mrb[0].mxu0
  %1288 = vmatprep.mubr.f32.mxu0 0.0
  %1289 = vmatmul.mubr.f32.gmra.mrb[0].mxu0 %v1189
  %v1290 = vpop.f32.mrb[0].mxu0
  %v1291 = vadd.f32 0.0, %v1290
  %v1292 = vpop.f32.mrb[0].mxu0
  %1293 = vmatprep.mubr.f32.mxu0 0.0
  %1294 = vmatmul.mubr.f32.gmra.mrb[0].mxu0 %v1192
  %v1295 = vpop.f32.mrb[0].mxu0
  %v1296 = vadd.f32 0.0, %v1295
  %v1297 = vpop.f32.mrb[0].mxu0
  %1298 = vdwg.mxu0
  %v1299 = vrcp.pop %v1124
  %v1300 = vmul.f32 %v1261, %v1299
  %v1301 = vrcp.pop %v1127
  %v1302 = vmul.f32 %v1266, %v1301
  %v1303 = vrcp.pop %v1130
  %v1304 = vmul.f32 %v1271, %v1303
  %v1305 = vrcp.pop %v1133
  %v1306 = vmul.f32 %v1276, %v1305
  %v1307 = vrcp.pop %v1136
  %v1308 = vmul.f32 %v1281, %v1307
  %v1309 = vrcp.pop %v1139
  %v1310 = vmul.f32 %v1286, %v1309
  %v1311 = vrcp.pop %v1142
  %v1312 = vmul.f32 %v1291, %v1311
  %v1313 = vrcp.pop %v1145
  %v1314 = vmul.f32 %v1296, %v1313
  %v1316 = vsel %vm380, %v1300, 0
  %v1319 = vsel %vm380, %v1302, 0
  %v1322 = vsel %vm380, %v1304, 0
  %v1325 = vsel %vm380, %v1306, 0
  %v1328 = vsel %vm380, %v1308, 0
  %v1331 = vsel %vm380, %v1310, 0
  %v1334 = vsel %vm380, %v1312, 0
  %v1337 = vsel %vm380, %v1314, 0
  %1339 = vmatprep.subr.mxu0 0.0
  %1340 = vmatpush1.msra.mxu0 %v338
  %1341 = vmatprep.subr.mxu0 0.0
  %1342 = vmatpush1.msra.mxu0 0.0
  %1343 = vmatprep.subr.mxu0 0.0
  %1344 = vmatpush1.msra.mxu0 0.0
  %1345 = vmatprep.subr.mxu0 0.0
  %1346 = vmatpush1.msra.mxu0 0.0
  %1347 = vmatprep.subr.mxu0 0.0
  %1348 = vmatpush1.msra.mxu0 0.0
  %1349 = vmatprep.subr.mxu0 0.0
  %1350 = vmatpush1.msra.mxu0 0.0
  %1351 = vmatprep.subr.mxu0 0.0
  %1352 = vmatpush1.msra.mxu0 0.0
  %1353 = vmatprep.subr.mxu0 0.0
  %1354 = vmatpush1.msra.mxu0 0.0
  %1355 = vmatprep.subr.mxu0 0.0
  %1356 = vmatpush1.msra.mxu0 0.0
  %1357 = vmatprep.subr.mxu0 0.0
  %1358 = vmatpush1.msra.mxu0 0.0
  %1359 = vmatprep.subr.mxu0 0.0
  %1360 = vmatpush1.msra.mxu0 0.0
  %1361 = vmatprep.subr.mxu0 0.0
  %1362 = vmatpush1.msra.mxu0 0.0
  %1363 = vmatprep.subr.mxu0 0.0
  %1364 = vmatpush1.msra.mxu0 0.0
  %1365 = vmatprep.subr.mxu0 0.0
  %1366 = vmatpush1.msra.mxu0 0.0
  %1367 = vmatprep.subr.mxu0 0.0
  %1368 = vmatpush1.msra.mxu0 0.0
  %1369 = vmatprep.subr.mxu0 0.0
  %1370 = vmatpush1.msra.mxu0 0.0
  %1371 = vmatprep.subr.mxu0 0.0
  %1372 = vmatpush1.msra.mxu0 0.0
  %1373 = vmatprep.subr.mxu0 0.0
  %1374 = vmatpush1.msra.mxu0 0.0
  %1375 = vmatprep.subr.mxu0 0.0
  %1376 = vmatpush1.msra.mxu0 0.0
  %1377 = vmatprep.subr.mxu0 0.0
  %1378 = vmatpush1.msra.mxu0 0.0
  %1379 = vmatprep.subr.mxu0 0.0
  %1380 = vmatpush1.msra.mxu0 0.0
  %1381 = vmatprep.subr.mxu0 0.0
  %1382 = vmatpush1.msra.mxu0 0.0
  %1383 = vmatprep.subr.mxu0 0.0
  %1384 = vmatpush1.msra.mxu0 0.0
  %1385 = vmatprep.subr.mxu0 0.0
  %1386 = vmatpush1.msra.mxu0 0.0
  %1387 = vmatprep.subr.mxu0 0.0
  %1388 = vmatpush1.msra.mxu0 0.0
  %1389 = vmatprep.subr.mxu0 0.0
  %1390 = vmatpush1.msra.mxu0 0.0
  %1391 = vmatprep.subr.mxu0 0.0
  %1392 = vmatpush1.msra.mxu0 0.0
  %1393 = vmatprep.subr.mxu0 0.0
  %1394 = vmatpush1.msra.mxu0 0.0
  %1395 = vmatprep.subr.mxu0 0.0
  %1396 = vmatpush1.msra.mxu0 0.0
  %1397 = vmatprep.subr.mxu0 0.0
  %1398 = vmatpush1.msra.mxu0 0.0
  %1399 = vmatprep.subr.mxu0 0.0
  %1400 = vmatpush1.msra.mxu0 0.0
  %1401 = vmatprep.subr.mxu0 0.0
  %1402 = vmatpush1.msra.mxu0 0.0
  %1403 = vmatprep.mubr.f32.mxu0 0.0
  %1404 = vmatmul.mubr.f32.gmra.mrb[0].mxu0 %v1316
  %v1405 = vpop.f32.mrb[0].mxu0
  %v1406 = vadd.f32 0.0, %v1405
  %v1407 = vpop.f32.mrb[0].mxu0
  %1408 = vmatprep.mubr.f32.mxu0 0.0
  %1409 = vmatmul.mubr.f32.gmra.mrb[0].mxu0 %v1319
  %v1410 = vpop.f32.mrb[0].mxu0
  %v1411 = vadd.f32 0.0, %v1410
  %v1412 = vpop.f32.mrb[0].mxu0
  %1413 = vmatprep.mubr.f32.mxu0 0.0
  %1414 = vmatmul.mubr.f32.gmra.mrb[0].mxu0 %v1322
  %v1415 = vpop.f32.mrb[0].mxu0
  %v1416 = vadd.f32 0.0, %v1415
  %v1417 = vpop.f32.mrb[0].mxu0
  %1418 = vmatprep.mubr.f32.mxu0 0.0
  %1419 = vmatmul.mubr.f32.gmra.mrb[0].mxu0 %v1325
  %v1420 = vpop.f32.mrb[0].mxu0
  %v1421 = vadd.f32 0.0, %v1420
  %v1422 = vpop.f32.mrb[0].mxu0
  %1423 = vmatprep.mubr.f32.mxu0 0.0
  %1424 = vmatmul.mubr.f32.gmra.mrb[0].mxu0 %v1328
  %v1425 = vpop.f32.mrb[0].mxu0
  %v1426 = vadd.f32 0.0, %v1425
  %v1427 = vpop.f32.mrb[0].mxu0
  %1428 = vmatprep.mubr.f32.mxu0 0.0
  %1429 = vmatmul.mubr.f32.gmra.mrb[0].mxu0 %v1331
  %v1430 = vpop.f32.mrb[0].mxu0
  %v1431 = vadd.f32 0.0, %v1430
  %v1432 = vpop.f32.mrb[0].mxu0
  %1433 = vmatprep.mubr.f32.mxu0 0.0
  %1434 = vmatmul.mubr.f32.gmra.mrb[0].mxu0 %v1334
  %v1435 = vpop.f32.mrb[0].mxu0
  %v1436 = vadd.f32 0.0, %v1435
  %v1437 = vpop.f32.mrb[0].mxu0
  %1438 = vmatprep.mubr.f32.mxu0 0.0
  %1439 = vmatmul.mubr.f32.gmra.mrb[0].mxu0 %v1337
  %v1440 = vpop.f32.mrb[0].mxu0
  %v1441 = vadd.f32 0.0, %v1440
  %v1442 = vpop.f32.mrb[0].mxu0
  %1443 = vdwg.mxu0
  %v1444 = vadd.f32 %v897, %v1406
  %v1445 = vadd.f32 %v898, %v1411
  %v1446 = vadd.f32 %v899, %v1416
  %v1447 = vadd.f32 %v900, %v1421
  %v1448 = vadd.f32 %v901, %v1426
  %v1449 = vadd.f32 %v902, %v1431
  %v1450 = vadd.f32 %v903, %v1436
  %v1451 = vadd.f32 %v904, %v1441
  %1452 = vrot.lane.b32.xlu0 %v321, 112
  %v1453 = vpop.permute.xlu0 %1452
  %1454 = vrot.lane.b32.xlu0 %v322, 112
  %v1455 = vpop.permute.xlu0 %1454
  %1456 = vrot.lane.b32.xlu0 %v323, 112
  %v1457 = vpop.permute.xlu0 %1456
  %1458 = vrot.lane.b32.xlu0 %v324, 112
  %v1459 = vpop.permute.xlu0 %1458
  %1460 = vrot.lane.b32.xlu0 %v325, 112
  %v1461 = vpop.permute.xlu0 %1460
  %1462 = vrot.lane.b32.xlu0 %v326, 112
  %v1463 = vpop.permute.xlu0 %1462
  %1464 = vrot.lane.b32.xlu0 %v327, 112
  %v1465 = vpop.permute.xlu0 %1464
  %1466 = vrot.lane.b32.xlu0 %v328, 112
  %v1467 = vpop.permute.xlu0 %1466
  %1468 = vrot.lane.b32.xlu0 %v283, 80
  %v1469 = vpop.permute.xlu0 %1468
  %1470 = vrot.lane.b32.xlu0 %v288, 80
  %v1471 = vpop.permute.xlu0 %1470
  %1472 = vrot.lane.b32.xlu0 %v293, 80
  %v1473 = vpop.permute.xlu0 %1472
  %1474 = vrot.lane.b32.xlu0 %v298, 80
  %v1475 = vpop.permute.xlu0 %1474
  %1476 = vrot.lane.b32.xlu0 %v303, 80
  %v1477 = vpop.permute.xlu0 %1476
  %1478 = vrot.lane.b32.xlu0 %v308, 80
  %v1479 = vpop.permute.xlu0 %1478
  %1480 = vrot.lane.b32.xlu0 %v313, 80
  %v1481 = vpop.permute.xlu0 %1480
  %1482 = vrot.lane.b32.xlu0 %v318, 80
  %v1483 = vpop.permute.xlu0 %1482
  %v1484 = vsel %vm380, %v1453, 0
  %v1486 = vsel %vm380, %v1455, 0
  %v1488 = vsel %vm380, %v1457, 0
  %v1490 = vsel %vm380, %v1459, 0
  %v1492 = vsel %vm380, %v1461, 0
  %v1494 = vsel %vm380, %v1463, 0
  %v1496 = vsel %vm380, %v1465, 0
  %v1498 = vsel %vm380, %v1467, 0
  %v1500 = vsel %vm380, %v1469, 0
  %v1502 = vsel %vm380, %v1471, 0
  %v1504 = vsel %vm380, %v1473, 0
  %v1506 = vsel %vm380, %v1475, 0
  %v1508 = vsel %vm380, %v1477, 0
  %v1510 = vsel %vm380, %v1479, 0
  %v1512 = vsel %vm380, %v1481, 0
  %v1514 = vsel %vm380, %v1483, 0
  %1516 = vmatprep.subr.mxu0 0.0
  %1517 = vmatpush1.xpose.msra.mxu0 %v1500
  %1518 = vmatprep.subr.mxu0 0.0
  %1519 = vmatpush1.xpose.msra.mxu0 %v1502
  %1520 = vmatprep.subr.mxu0 0.0
  %1521 = vmatpush1.xpose.msra.mxu0 %v1504
  %1522 = vmatprep.subr.mxu0 0.0
  %1523 = vmatpush1.xpose.msra.mxu0 %v1506
  %1524 = vmatprep.subr.mxu0 0.0
  %1525 = vmatpush1.xpose.msra.mxu0 %v1508
  %1526 = vmatprep.subr.mxu0 0.0
  %1527 = vmatpush1.xpose.msra.mxu0 %v1510
  %1528 = vmatprep.subr.mxu0 0.0
  %1529 = vmatpush1.xpose.msra.mxu0 %v1512
  %1530 = vmatprep.subr.mxu0 0.0
  %1531 = vmatpush1.xpose.msra.mxu0 %v1514
  %1532 = vmatprep.subr.mxu0 0.0
  %1533 = vmatpush1.xpose.msra.mxu0 0.0
  %1534 = vmatprep.subr.mxu0 0.0
  %1535 = vmatpush1.xpose.msra.mxu0 0.0
  %1536 = vmatprep.subr.mxu0 0.0
  %1537 = vmatpush1.xpose.msra.mxu0 0.0
  %1538 = vmatprep.subr.mxu0 0.0
  %1539 = vmatpush1.xpose.msra.mxu0 0.0
  %1540 = vmatprep.subr.mxu0 0.0
  %1541 = vmatpush1.xpose.msra.mxu0 0.0
  %1542 = vmatprep.subr.mxu0 0.0
  %1543 = vmatpush1.xpose.msra.mxu0 0.0
  %1544 = vmatprep.subr.mxu0 0.0
  %1545 = vmatpush1.xpose.msra.mxu0 0.0
  %1546 = vmatprep.subr.mxu0 0.0
  %1547 = vmatpush1.xpose.msra.mxu0 0.0
  %1548 = vmatprep.subr.mxu0 0.0
  %1549 = vmatpush1.xpose.msra.mxu0 0.0
  %1550 = vmatprep.subr.mxu0 0.0
  %1551 = vmatpush1.xpose.msra.mxu0 0.0
  %1552 = vmatprep.subr.mxu0 0.0
  %1553 = vmatpush1.xpose.msra.mxu0 0.0
  %1554 = vmatprep.subr.mxu0 0.0
  %1555 = vmatpush1.xpose.msra.mxu0 0.0
  %1556 = vmatprep.subr.mxu0 0.0
  %1557 = vmatpush1.xpose.msra.mxu0 0.0
  %1558 = vmatprep.subr.mxu0 0.0
  %1559 = vmatpush1.xpose.msra.mxu0 0.0
  %1560 = vmatprep.subr.mxu0 0.0
  %1561 = vmatpush1.xpose.msra.mxu0 0.0
  %1562 = vmatprep.subr.mxu0 0.0
  %1563 = vmatpush1.xpose.msra.mxu0 0.0
  %1564 = vmatprep.subr.mxu0 0.0
  %1565 = vmatpush1.xpose.msra.mxu0 0.0
  %1566 = vmatprep.subr.mxu0 0.0
  %1567 = vmatpush1.xpose.msra.mxu0 0.0
  %1568 = vmatprep.subr.mxu0 0.0
  %1569 = vmatpush1.xpose.msra.mxu0 0.0
  %1570 = vmatprep.subr.mxu0 0.0
  %1571 = vmatpush1.xpose.msra.mxu0 0.0
  %1572 = vmatprep.subr.mxu0 0.0
  %1573 = vmatpush1.xpose.msra.mxu0 0.0
  %1574 = vmatprep.subr.mxu0 0.0
  %1575 = vmatpush1.xpose.msra.mxu0 0.0
  %1576 = vmatprep.subr.mxu0 0.0
  %1577 = vmatpush1.xpose.msra.mxu0 0.0
  %1578 = vmatprep.subr.mxu0 0.0
  %1579 = vmatpush1.xpose.msra.mxu0 0.0
  %1580 = vmatprep.mubr.f32.mxu0 0.0
  %1581 = vmatmul.mubr.f32.gmra.mrb[0].mxu0 %v1484
  %v1582 = vpop.f32.mrb[0].mxu0
  %v1583 = vadd.f32 %v329, %v1582
  %v1584 = vpop.f32.mrb[0].mxu0
  %1585 = vmatprep.mubr.f32.mxu0 0.0
  %1586 = vmatmul.mubr.f32.gmra.mrb[0].mxu0 %v1486
  %v1587 = vpop.f32.mrb[0].mxu0
  %v1588 = vadd.f32 %v330, %v1587
  %v1589 = vpop.f32.mrb[0].mxu0
  %1590 = vmatprep.mubr.f32.mxu0 0.0
  %1591 = vmatmul.mubr.f32.gmra.mrb[0].mxu0 %v1488
  %v1592 = vpop.f32.mrb[0].mxu0
  %v1593 = vadd.f32 %v331, %v1592
  %v1594 = vpop.f32.mrb[0].mxu0
  %1595 = vmatprep.mubr.f32.mxu0 0.0
  %1596 = vmatmul.mubr.f32.gmra.mrb[0].mxu0 %v1490
  %v1597 = vpop.f32.mrb[0].mxu0
  %v1598 = vadd.f32 %v332, %v1597
  %v1599 = vpop.f32.mrb[0].mxu0
  %1600 = vmatprep.mubr.f32.mxu0 0.0
  %1601 = vmatmul.mubr.f32.gmra.mrb[0].mxu0 %v1492
  %v1602 = vpop.f32.mrb[0].mxu0
  %v1603 = vadd.f32 %v333, %v1602
  %v1604 = vpop.f32.mrb[0].mxu0
  %1605 = vmatprep.mubr.f32.mxu0 0.0
  %1606 = vmatmul.mubr.f32.gmra.mrb[0].mxu0 %v1494
  %v1607 = vpop.f32.mrb[0].mxu0
  %v1608 = vadd.f32 %v334, %v1607
  %v1609 = vpop.f32.mrb[0].mxu0
  %1610 = vmatprep.mubr.f32.mxu0 0.0
  %1611 = vmatmul.mubr.f32.gmra.mrb[0].mxu0 %v1496
  %v1612 = vpop.f32.mrb[0].mxu0
  %v1613 = vadd.f32 %v335, %v1612
  %v1614 = vpop.f32.mrb[0].mxu0
  %1615 = vmatprep.mubr.f32.mxu0 0.0
  %1616 = vmatmul.mubr.f32.gmra.mrb[0].mxu0 %v1498
  %v1617 = vpop.f32.mrb[0].mxu0
  %v1618 = vadd.f32 %v336, %v1617
  %v1619 = vpop.f32.mrb[0].mxu0
  %1620 = vdwg.mxu0
  %v1621 = vsel %vm526, %v1583, -inf
  %1622 = vmax.xlane.f32.xlu0 %v1621
  %v1623 = vpop.xlane.xlu0 %1622
  %v1624 = vsel %vm526, %v1588, -inf
  %1625 = vmax.xlane.f32.xlu0 %v1624
  %v1626 = vpop.xlane.xlu0 %1625
  %v1627 = vsel %vm526, %v1593, -inf
  %1628 = vmax.xlane.f32.xlu0 %v1627
  %v1629 = vpop.xlane.xlu0 %1628
  %v1630 = vsel %vm526, %v1598, -inf
  %1631 = vmax.xlane.f32.xlu0 %v1630
  %v1632 = vpop.xlane.xlu0 %1631
  %v1633 = vsel %vm526, %v1603, -inf
  %1634 = vmax.xlane.f32.xlu0 %v1633
  %v1635 = vpop.xlane.xlu0 %1634
  %v1636 = vsel %vm526, %v1608, -inf
  %1637 = vmax.xlane.f32.xlu0 %v1636
  %v1638 = vpop.xlane.xlu0 %1637
  %v1639 = vsel %vm526, %v1613, -inf
  %1640 = vmax.xlane.f32.xlu0 %v1639
  %v1641 = vpop.xlane.xlu0 %1640
  %v1642 = vsel %vm526, %v1618, -inf
  %1643 = vmax.xlane.f32.xlu0 %v1642
  %v1644 = vpop.xlane.xlu0 %1643
  %v1645 = vsub.f32 %v1583, %v1623
  %v1646 = vsub.f32 %v1588, %v1626
  %v1647 = vsub.f32 %v1593, %v1629
  %v1648 = vsub.f32 %v1598, %v1632
  %v1649 = vsub.f32 %v1603, %v1635
  %v1650 = vsub.f32 %v1608, %v1638
  %v1651 = vsub.f32 %v1613, %v1641
  %v1652 = vsub.f32 %v1618, %v1644
  %v1653 = vmul.f32 %v1645, 1.442695
  %v1654 = vpow.pop %v1653
  %v1655 = vmul.f32 %v1646, 1.442695
  %v1656 = vpow.pop %v1655
  %v1657 = vmul.f32 %v1647, 1.442695
  %v1658 = vpow.pop %v1657
  %v1659 = vmul.f32 %v1648, 1.442695
  %v1660 = vpow.pop %v1659
  %v1661 = vmul.f32 %v1649, 1.442695
  %v1662 = vpow.pop %v1661
  %v1663 = vmul.f32 %v1650, 1.442695
  %v1664 = vpow.pop %v1663
  %v1665 = vmul.f32 %v1651, 1.442695
  %v1666 = vpow.pop %v1665
  %v1667 = vmul.f32 %v1652, 1.442695
  %v1668 = vpow.pop %v1667
  %v1669 = vsel %vm526, %v1654, 0.0
  %1670 = vadd.xlane.f32.xlu0 %v1669
  %v1671 = vpop.xlane.xlu0 %1670
  %v1672 = vsel %vm526, %v1656, 0.0
  %1673 = vadd.xlane.f32.xlu0 %v1672
  %v1674 = vpop.xlane.xlu0 %1673
  %v1675 = vsel %vm526, %v1658, 0.0
  %1676 = vadd.xlane.f32.xlu0 %v1675
  %v1677 = vpop.xlane.xlu0 %1676
  %v1678 = vsel %vm526, %v1660, 0.0
  %1679 = vadd.xlane.f32.xlu0 %v1678
  %v1680 = vpop.xlane.xlu0 %1679
  %v1681 = vsel %vm526, %v1662, 0.0
  %1682 = vadd.xlane.f32.xlu0 %v1681
  %v1683 = vpop.xlane.xlu0 %1682
  %v1684 = vsel %vm526, %v1664, 0.0
  %1685 = vadd.xlane.f32.xlu0 %v1684
  %v1686 = vpop.xlane.xlu0 %1685
  %v1687 = vsel %vm526, %v1666, 0.0
  %1688 = vadd.xlane.f32.xlu0 %v1687
  %v1689 = vpop.xlane.xlu0 %1688
  %v1690 = vsel %vm526, %v1668, 0.0
  %1691 = vadd.xlane.f32.xlu0 %v1690
  %v1692 = vpop.xlane.xlu0 %1691
  %1693 = vrot.lane.b32.xlu0 %v283, 48
  %v1694 = vpop.permute.xlu0 %1693
  %1695 = vrot.lane.b32.xlu0 %v288, 48
  %v1696 = vpop.permute.xlu0 %1695
  %1697 = vrot.lane.b32.xlu0 %v293, 48
  %v1698 = vpop.permute.xlu0 %1697
  %1699 = vrot.lane.b32.xlu0 %v298, 48
  %v1700 = vpop.permute.xlu0 %1699
  %1701 = vrot.lane.b32.xlu0 %v303, 48
  %v1702 = vpop.permute.xlu0 %1701
  %1703 = vrot.lane.b32.xlu0 %v308, 48
  %v1704 = vpop.permute.xlu0 %1703
  %1705 = vrot.lane.b32.xlu0 %v313, 48
  %v1706 = vpop.permute.xlu0 %1705
  %1707 = vrot.lane.b32.xlu0 %v318, 48
  %v1708 = vpop.permute.xlu0 %1707
  %v1718 = vsel %vm526, %v1654, 0
  %v1721 = vsel %vm526, %v1656, 0
  %v1724 = vsel %vm526, %v1658, 0
  %v1727 = vsel %vm526, %v1660, 0
  %v1730 = vsel %vm526, %v1662, 0
  %v1733 = vsel %vm526, %v1664, 0
  %v1736 = vsel %vm526, %v1666, 0
  %v1739 = vsel %vm526, %v1668, 0
  %1741 = vmatprep.subr.mxu0 0.0
  %1742 = vmatpush1.msra.mxu0 %v1694
  %1743 = vmatprep.subr.mxu0 0.0
  %1744 = vmatpush1.msra.mxu0 %v1696
  %1745 = vmatprep.subr.mxu0 0.0
  %1746 = vmatpush1.msra.mxu0 %v1698
  %1747 = vmatprep.subr.mxu0 0.0
  %1748 = vmatpush1.msra.mxu0 %v1700
  %1749 = vmatprep.subr.mxu0 0.0
  %1750 = vmatpush1.msra.mxu0 %v1702
  %1751 = vmatprep.subr.mxu0 0.0
  %1752 = vmatpush1.msra.mxu0 %v1704
  %1753 = vmatprep.subr.mxu0 0.0
  %1754 = vmatpush1.msra.mxu0 %v1706
  %1755 = vmatprep.subr.mxu0 0.0
  %1756 = vmatpush1.msra.mxu0 %v1708
  %1757 = vmatprep.subr.mxu0 0.0
  %1758 = vmatpush1.msra.mxu0 0.0
  %1759 = vmatprep.subr.mxu0 0.0
  %1760 = vmatpush1.msra.mxu0 0.0
  %1761 = vmatprep.subr.mxu0 0.0
  %1762 = vmatpush1.msra.mxu0 0.0
  %1763 = vmatprep.subr.mxu0 0.0
  %1764 = vmatpush1.msra.mxu0 0.0
  %1765 = vmatprep.subr.mxu0 0.0
  %1766 = vmatpush1.msra.mxu0 0.0
  %1767 = vmatprep.subr.mxu0 0.0
  %1768 = vmatpush1.msra.mxu0 0.0
  %1769 = vmatprep.subr.mxu0 0.0
  %1770 = vmatpush1.msra.mxu0 0.0
  %1771 = vmatprep.subr.mxu0 0.0
  %1772 = vmatpush1.msra.mxu0 0.0
  %1773 = vmatprep.subr.mxu0 0.0
  %1774 = vmatpush1.msra.mxu0 0.0
  %1775 = vmatprep.subr.mxu0 0.0
  %1776 = vmatpush1.msra.mxu0 0.0
  %1777 = vmatprep.subr.mxu0 0.0
  %1778 = vmatpush1.msra.mxu0 0.0
  %1779 = vmatprep.subr.mxu0 0.0
  %1780 = vmatpush1.msra.mxu0 0.0
  %1781 = vmatprep.subr.mxu0 0.0
  %1782 = vmatpush1.msra.mxu0 0.0
  %1783 = vmatprep.subr.mxu0 0.0
  %1784 = vmatpush1.msra.mxu0 0.0
  %1785 = vmatprep.subr.mxu0 0.0
  %1786 = vmatpush1.msra.mxu0 0.0
  %1787 = vmatprep.subr.mxu0 0.0
  %1788 = vmatpush1.msra.mxu0 0.0
  %1789 = vmatprep.subr.mxu0 0.0
  %1790 = vmatpush1.msra.mxu0 0.0
  %1791 = vmatprep.subr.mxu0 0.0
  %1792 = vmatpush1.msra.mxu0 0.0
  %1793 = vmatprep.subr.mxu0 0.0
  %1794 = vmatpush1.msra.mxu0 0.0
  %1795 = vmatprep.subr.mxu0 0.0
  %1796 = vmatpush1.msra.mxu0 0.0
  %1797 = vmatprep.subr.mxu0 0.0
  %1798 = vmatpush1.msra.mxu0 0.0
  %1799 = vmatprep.subr.mxu0 0.0
  %1800 = vmatpush1.msra.mxu0 0.0
  %1801 = vmatprep.subr.mxu0 0.0
  %1802 = vmatpush1.msra.mxu0 0.0
  %1803 = vmatprep.subr.mxu0 0.0
  %1804 = vmatpush1.msra.mxu0 0.0
  %1805 = vmatprep.mubr.f32.mxu0 0.0
  %1806 = vmatmul.mubr.f32.gmra.mrb[0].mxu0 %v1718
  %v1807 = vpop.f32.mrb[0].mxu0
  %v1808 = vadd.f32 0.0, %v1807
  %v1809 = vpop.f32.mrb[0].mxu0
  %1810 = vmatprep.mubr.f32.mxu0 0.0
  %1811 = vmatmul.mubr.f32.gmra.mrb[0].mxu0 %v1721
  %v1812 = vpop.f32.mrb[0].mxu0
  %v1813 = vadd.f32 0.0, %v1812
  %v1814 = vpop.f32.mrb[0].mxu0
  %1815 = vmatprep.mubr.f32.mxu0 0.0
  %1816 = vmatmul.mubr.f32.gmra.mrb[0].mxu0 %v1724
  %v1817 = vpop.f32.mrb[0].mxu0
  %v1818 = vadd.f32 0.0, %v1817
  %v1819 = vpop.f32.mrb[0].mxu0
  %1820 = vmatprep.mubr.f32.mxu0 0.0
  %1821 = vmatmul.mubr.f32.gmra.mrb[0].mxu0 %v1727
  %v1822 = vpop.f32.mrb[0].mxu0
  %v1823 = vadd.f32 0.0, %v1822
  %v1824 = vpop.f32.mrb[0].mxu0
  %1825 = vmatprep.mubr.f32.mxu0 0.0
  %1826 = vmatmul.mubr.f32.gmra.mrb[0].mxu0 %v1730
  %v1827 = vpop.f32.mrb[0].mxu0
  %v1828 = vadd.f32 0.0, %v1827
  %v1829 = vpop.f32.mrb[0].mxu0
  %1830 = vmatprep.mubr.f32.mxu0 0.0
  %1831 = vmatmul.mubr.f32.gmra.mrb[0].mxu0 %v1733
  %v1832 = vpop.f32.mrb[0].mxu0
  %v1833 = vadd.f32 0.0, %v1832
  %v1834 = vpop.f32.mrb[0].mxu0
  %1835 = vmatprep.mubr.f32.mxu0 0.0
  %1836 = vmatmul.mubr.f32.gmra.mrb[0].mxu0 %v1736
  %v1837 = vpop.f32.mrb[0].mxu0
  %v1838 = vadd.f32 0.0, %v1837
  %v1839 = vpop.f32.mrb[0].mxu0
  %1840 = vmatprep.mubr.f32.mxu0 0.0
  %1841 = vmatmul.mubr.f32.gmra.mrb[0].mxu0 %v1739
  %v1842 = vpop.f32.mrb[0].mxu0
  %v1843 = vadd.f32 0.0, %v1842
  %v1844 = vpop.f32.mrb[0].mxu0
  %1845 = vdwg.mxu0
  %v1846 = vrcp.pop %v1671
  %v1847 = vmul.f32 %v1808, %v1846
  %v1848 = vrcp.pop %v1674
  %v1849 = vmul.f32 %v1813, %v1848
  %v1850 = vrcp.pop %v1677
  %v1851 = vmul.f32 %v1818, %v1850
  %v1852 = vrcp.pop %v1680
  %v1853 = vmul.f32 %v1823, %v1852
  %v1854 = vrcp.pop %v1683
  %v1855 = vmul.f32 %v1828, %v1854
  %v1856 = vrcp.pop %v1686
  %v1857 = vmul.f32 %v1833, %v1856
  %v1858 = vrcp.pop %v1689
  %v1859 = vmul.f32 %v1838, %v1858
  %v1860 = vrcp.pop %v1692
  %v1861 = vmul.f32 %v1843, %v1860
  %v1863 = vsel %vm380, %v1847, 0
  %v1866 = vsel %vm380, %v1849, 0
  %v1869 = vsel %vm380, %v1851, 0
  %v1872 = vsel %vm380, %v1853, 0
  %v1875 = vsel %vm380, %v1855, 0
  %v1878 = vsel %vm380, %v1857, 0
  %v1881 = vsel %vm380, %v1859, 0
  %v1884 = vsel %vm380, %v1861, 0
  %1886 = vmatprep.subr.mxu0 0.0
  %1887 = vmatpush1.msra.mxu0 %v339
  %1888 = vmatprep.subr.mxu0 0.0
  %1889 = vmatpush1.msra.mxu0 0.0
  %1890 = vmatprep.subr.mxu0 0.0
  %1891 = vmatpush1.msra.mxu0 0.0
  %1892 = vmatprep.subr.mxu0 0.0
  %1893 = vmatpush1.msra.mxu0 0.0
  %1894 = vmatprep.subr.mxu0 0.0
  %1895 = vmatpush1.msra.mxu0 0.0
  %1896 = vmatprep.subr.mxu0 0.0
  %1897 = vmatpush1.msra.mxu0 0.0
  %1898 = vmatprep.subr.mxu0 0.0
  %1899 = vmatpush1.msra.mxu0 0.0
  %1900 = vmatprep.subr.mxu0 0.0
  %1901 = vmatpush1.msra.mxu0 0.0
  %1902 = vmatprep.subr.mxu0 0.0
  %1903 = vmatpush1.msra.mxu0 0.0
  %1904 = vmatprep.subr.mxu0 0.0
  %1905 = vmatpush1.msra.mxu0 0.0
  %1906 = vmatprep.subr.mxu0 0.0
  %1907 = vmatpush1.msra.mxu0 0.0
  %1908 = vmatprep.subr.mxu0 0.0
  %1909 = vmatpush1.msra.mxu0 0.0
  %1910 = vmatprep.subr.mxu0 0.0
  %1911 = vmatpush1.msra.mxu0 0.0
  %1912 = vmatprep.subr.mxu0 0.0
  %1913 = vmatpush1.msra.mxu0 0.0
  %1914 = vmatprep.subr.mxu0 0.0
  %1915 = vmatpush1.msra.mxu0 0.0
  %1916 = vmatprep.subr.mxu0 0.0
  %1917 = vmatpush1.msra.mxu0 0.0
  %1918 = vmatprep.subr.mxu0 0.0
  %1919 = vmatpush1.msra.mxu0 0.0
  %1920 = vmatprep.subr.mxu0 0.0
  %1921 = vmatpush1.msra.mxu0 0.0
  %1922 = vmatprep.subr.mxu0 0.0
  %1923 = vmatpush1.msra.mxu0 0.0
  %1924 = vmatprep.subr.mxu0 0.0
  %1925 = vmatpush1.msra.mxu0 0.0
  %1926 = vmatprep.subr.mxu0 0.0
  %1927 = vmatpush1.msra.mxu0 0.0
  %1928 = vmatprep.subr.mxu0 0.0
  %1929 = vmatpush1.msra.mxu0 0.0
  %1930 = vmatprep.subr.mxu0 0.0
  %1931 = vmatpush1.msra.mxu0 0.0
  %1932 = vmatprep.subr.mxu0 0.0
  %1933 = vmatpush1.msra.mxu0 0.0
  %1934 = vmatprep.subr.mxu0 0.0
  %1935 = vmatpush1.msra.mxu0 0.0
  %1936 = vmatprep.subr.mxu0 0.0
  %1937 = vmatpush1.msra.mxu0 0.0
  %1938 = vmatprep.subr.mxu0 0.0
  %1939 = vmatpush1.msra.mxu0 0.0
  %1940 = vmatprep.subr.mxu0 0.0
  %1941 = vmatpush1.msra.mxu0 0.0
  %1942 = vmatprep.subr.mxu0 0.0
  %1943 = vmatpush1.msra.mxu0 0.0
  %1944 = vmatprep.subr.mxu0 0.0
  %1945 = vmatpush1.msra.mxu0 0.0
  %1946 = vmatprep.subr.mxu0 0.0
  %1947 = vmatpush1.msra.mxu0 0.0
  %1948 = vmatprep.subr.mxu0 0.0
  %1949 = vmatpush1.msra.mxu0 0.0
  %1950 = vmatprep.mubr.f32.mxu0 0.0
  %1951 = vmatmul.mubr.f32.gmra.mrb[0].mxu0 %v1863
  %v1952 = vpop.f32.mrb[0].mxu0
  %v1953 = vadd.f32 0.0, %v1952
  %v1954 = vpop.f32.mrb[0].mxu0
  %1955 = vmatprep.mubr.f32.mxu0 0.0
  %1956 = vmatmul.mubr.f32.gmra.mrb[0].mxu0 %v1866
  %v1957 = vpop.f32.mrb[0].mxu0
  %v1958 = vadd.f32 0.0, %v1957
  %v1959 = vpop.f32.mrb[0].mxu0
  %1960 = vmatprep.mubr.f32.mxu0 0.0
  %1961 = vmatmul.mubr.f32.gmra.mrb[0].mxu0 %v1869
  %v1962 = vpop.f32.mrb[0].mxu0
  %v1963 = vadd.f32 0.0, %v1962
  %v1964 = vpop.f32.mrb[0].mxu0
  %1965 = vmatprep.mubr.f32.mxu0 0.0
  %1966 = vmatmul.mubr.f32.gmra.mrb[0].mxu0 %v1872
  %v1967 = vpop.f32.mrb[0].mxu0
  %v1968 = vadd.f32 0.0, %v1967
  %v1969 = vpop.f32.mrb[0].mxu0
  %1970 = vmatprep.mubr.f32.mxu0 0.0
  %1971 = vmatmul.mubr.f32.gmra.mrb[0].mxu0 %v1875
  %v1972 = vpop.f32.mrb[0].mxu0
  %v1973 = vadd.f32 0.0, %v1972
  %v1974 = vpop.f32.mrb[0].mxu0
  %1975 = vmatprep.mubr.f32.mxu0 0.0
  %1976 = vmatmul.mubr.f32.gmra.mrb[0].mxu0 %v1878
  %v1977 = vpop.f32.mrb[0].mxu0
  %v1978 = vadd.f32 0.0, %v1977
  %v1979 = vpop.f32.mrb[0].mxu0
  %1980 = vmatprep.mubr.f32.mxu0 0.0
  %1981 = vmatmul.mubr.f32.gmra.mrb[0].mxu0 %v1881
  %v1982 = vpop.f32.mrb[0].mxu0
  %v1983 = vadd.f32 0.0, %v1982
  %v1984 = vpop.f32.mrb[0].mxu0
  %1985 = vmatprep.mubr.f32.mxu0 0.0
  %1986 = vmatmul.mubr.f32.gmra.mrb[0].mxu0 %v1884
  %v1987 = vpop.f32.mrb[0].mxu0
  %v1988 = vadd.f32 0.0, %v1987
  %v1989 = vpop.f32.mrb[0].mxu0
  %1990 = vdwg.mxu0
  %v1991 = vadd.f32 %v1444, %v1953
  %v1992 = vadd.f32 %v1445, %v1958
  %v1993 = vadd.f32 %v1446, %v1963
  %v1994 = vadd.f32 %v1447, %v1968
  %v1995 = vadd.f32 %v1448, %v1973
  %v1996 = vadd.f32 %v1449, %v1978
  %v1997 = vadd.f32 %v1450, %v1983
  %v1998 = vadd.f32 %v1451, %v1988
  %1999 = vrot.lane.b32.xlu0 %v321, 104
  %v2000 = vpop.permute.xlu0 %1999
  %2001 = vrot.lane.b32.xlu0 %v322, 104
  %v2002 = vpop.permute.xlu0 %2001
  %2003 = vrot.lane.b32.xlu0 %v323, 104
  %v2004 = vpop.permute.xlu0 %2003
  %2005 = vrot.lane.b32.xlu0 %v324, 104
  %v2006 = vpop.permute.xlu0 %2005
  %2007 = vrot.lane.b32.xlu0 %v325, 104
  %v2008 = vpop.permute.xlu0 %2007
  %2009 = vrot.lane.b32.xlu0 %v326, 104
  %v2010 = vpop.permute.xlu0 %2009
  %2011 = vrot.lane.b32.xlu0 %v327, 104
  %v2012 = vpop.permute.xlu0 %2011
  %2013 = vrot.lane.b32.xlu0 %v328, 104
  %v2014 = vpop.permute.xlu0 %2013
  %2015 = vrot.lane.b32.xlu0 %v283, 72
  %v2016 = vpop.permute.xlu0 %2015
  %2017 = vrot.lane.b32.xlu0 %v288, 72
  %v2018 = vpop.permute.xlu0 %2017
  %2019 = vrot.lane.b32.xlu0 %v293, 72
  %v2020 = vpop.permute.xlu0 %2019
  %2021 = vrot.lane.b32.xlu0 %v298, 72
  %v2022 = vpop.permute.xlu0 %2021
  %2023 = vrot.lane.b32.xlu0 %v303, 72
  %v2024 = vpop.permute.xlu0 %2023
  %2025 = vrot.lane.b32.xlu0 %v308, 72
  %v2026 = vpop.permute.xlu0 %2025
  %2027 = vrot.lane.b32.xlu0 %v313, 72
  %v2028 = vpop.permute.xlu0 %2027
  %2029 = vrot.lane.b32.xlu0 %v318, 72
  %v2030 = vpop.permute.xlu0 %2029
  %v2031 = vsel %vm380, %v2000, 0
  %v2033 = vsel %vm380, %v2002, 0
  %v2035 = vsel %vm380, %v2004, 0
  %v2037 = vsel %vm380, %v2006, 0
  %v2039 = vsel %vm380, %v2008, 0
  %v2041 = vsel %vm380, %v2010, 0
  %v2043 = vsel %vm380, %v2012, 0
  %v2045 = vsel %vm380, %v2014, 0
  %v2047 = vsel %vm380, %v2016, 0
  %v2049 = vsel %vm380, %v2018, 0
  %v2051 = vsel %vm380, %v2020, 0
  %v2053 = vsel %vm380, %v2022, 0
  %v2055 = vsel %vm380, %v2024, 0
  %v2057 = vsel %vm380, %v2026, 0
  %v2059 = vsel %vm380, %v2028, 0
  %v2061 = vsel %vm380, %v2030, 0
  %2063 = vmatprep.subr.mxu0 0.0
  %2064 = vmatpush1.xpose.msra.mxu0 %v2047
  %2065 = vmatprep.subr.mxu0 0.0
  %2066 = vmatpush1.xpose.msra.mxu0 %v2049
  %2067 = vmatprep.subr.mxu0 0.0
  %2068 = vmatpush1.xpose.msra.mxu0 %v2051
  %2069 = vmatprep.subr.mxu0 0.0
  %2070 = vmatpush1.xpose.msra.mxu0 %v2053
  %2071 = vmatprep.subr.mxu0 0.0
  %2072 = vmatpush1.xpose.msra.mxu0 %v2055
  %2073 = vmatprep.subr.mxu0 0.0
  %2074 = vmatpush1.xpose.msra.mxu0 %v2057
  %2075 = vmatprep.subr.mxu0 0.0
  %2076 = vmatpush1.xpose.msra.mxu0 %v2059
  %2077 = vmatprep.subr.mxu0 0.0
  %2078 = vmatpush1.xpose.msra.mxu0 %v2061
  %2079 = vmatprep.subr.mxu0 0.0
  %2080 = vmatpush1.xpose.msra.mxu0 0.0
  %2081 = vmatprep.subr.mxu0 0.0
  %2082 = vmatpush1.xpose.msra.mxu0 0.0
  %2083 = vmatprep.subr.mxu0 0.0
  %2084 = vmatpush1.xpose.msra.mxu0 0.0
  %2085 = vmatprep.subr.mxu0 0.0
  %2086 = vmatpush1.xpose.msra.mxu0 0.0
  %2087 = vmatprep.subr.mxu0 0.0
  %2088 = vmatpush1.xpose.msra.mxu0 0.0
  %2089 = vmatprep.subr.mxu0 0.0
  %2090 = vmatpush1.xpose.msra.mxu0 0.0
  %2091 = vmatprep.subr.mxu0 0.0
  %2092 = vmatpush1.xpose.msra.mxu0 0.0
  %2093 = vmatprep.subr.mxu0 0.0
  %2094 = vmatpush1.xpose.msra.mxu0 0.0
  %2095 = vmatprep.subr.mxu0 0.0
  %2096 = vmatpush1.xpose.msra.mxu0 0.0
  %2097 = vmatprep.subr.mxu0 0.0
  %2098 = vmatpush1.xpose.msra.mxu0 0.0
  %2099 = vmatprep.subr.mxu0 0.0
  %2100 = vmatpush1.xpose.msra.mxu0 0.0
  %2101 = vmatprep.subr.mxu0 0.0
  %2102 = vmatpush1.xpose.msra.mxu0 0.0
  %2103 = vmatprep.subr.mxu0 0.0
  %2104 = vmatpush1.xpose.msra.mxu0 0.0
  %2105 = vmatprep.subr.mxu0 0.0
  %2106 = vmatpush1.xpose.msra.mxu0 0.0
  %2107 = vmatprep.subr.mxu0 0.0
  %2108 = vmatpush1.xpose.msra.mxu0 0.0
  %2109 = vmatprep.subr.mxu0 0.0
  %2110 = vmatpush1.xpose.msra.mxu0 0.0
  %2111 = vmatprep.subr.mxu0 0.0
  %2112 = vmatpush1.xpose.msra.mxu0 0.0
  %2113 = vmatprep.subr.mxu0 0.0
  %2114 = vmatpush1.xpose.msra.mxu0 0.0
  %2115 = vmatprep.subr.mxu0 0.0
  %2116 = vmatpush1.xpose.msra.mxu0 0.0
  %2117 = vmatprep.subr.mxu0 0.0
  %2118 = vmatpush1.xpose.msra.mxu0 0.0
  %2119 = vmatprep.subr.mxu0 0.0
  %2120 = vmatpush1.xpose.msra.mxu0 0.0
  %2121 = vmatprep.subr.mxu0 0.0
  %2122 = vmatpush1.xpose.msra.mxu0 0.0
  %2123 = vmatprep.subr.mxu0 0.0
  %2124 = vmatpush1.xpose.msra.mxu0 0.0
  %2125 = vmatprep.subr.mxu0 0.0
  %2126 = vmatpush1.xpose.msra.mxu0 0.0
  %2127 = vmatprep.mubr.f32.mxu0 0.0
  %2128 = vmatmul.mubr.f32.gmra.mrb[0].mxu0 %v2031
  %v2129 = vpop.f32.mrb[0].mxu0
  %v2130 = vadd.f32 %v329, %v2129
  %v2131 = vpop.f32.mrb[0].mxu0
  %2132 = vmatprep.mubr.f32.mxu0 0.0
  %2133 = vmatmul.mubr.f32.gmra.mrb[0].mxu0 %v2033
  %v2134 = vpop.f32.mrb[0].mxu0
  %v2135 = vadd.f32 %v330, %v2134
  %v2136 = vpop.f32.mrb[0].mxu0
  %2137 = vmatprep.mubr.f32.mxu0 0.0
  %2138 = vmatmul.mubr.f32.gmra.mrb[0].mxu0 %v2035
  %v2139 = vpop.f32.mrb[0].mxu0
  %v2140 = vadd.f32 %v331, %v2139
  %v2141 = vpop.f32.mrb[0].mxu0
  %2142 = vmatprep.mubr.f32.mxu0 0.0
  %2143 = vmatmul.mubr.f32.gmra.mrb[0].mxu0 %v2037
  %v2144 = vpop.f32.mrb[0].mxu0
  %v2145 = vadd.f32 %v332, %v2144
  %v2146 = vpop.f32.mrb[0].mxu0
  %2147 = vmatprep.mubr.f32.mxu0 0.0
  %2148 = vmatmul.mubr.f32.gmra.mrb[0].mxu0 %v2039
  %v2149 = vpop.f32.mrb[0].mxu0
  %v2150 = vadd.f32 %v333, %v2149
  %v2151 = vpop.f32.mrb[0].mxu0
  %2152 = vmatprep.mubr.f32.mxu0 0.0
  %2153 = vmatmul.mubr.f32.gmra.mrb[0].mxu0 %v2041
  %v2154 = vpop.f32.mrb[0].mxu0
  %v2155 = vadd.f32 %v334, %v2154
  %v2156 = vpop.f32.mrb[0].mxu0
  %2157 = vmatprep.mubr.f32.mxu0 0.0
  %2158 = vmatmul.mubr.f32.gmra.mrb[0].mxu0 %v2043
  %v2159 = vpop.f32.mrb[0].mxu0
  %v2160 = vadd.f32 %v335, %v2159
  %v2161 = vpop.f32.mrb[0].mxu0
  %2162 = vmatprep.mubr.f32.mxu0 0.0
  %2163 = vmatmul.mubr.f32.gmra.mrb[0].mxu0 %v2045
  %v2164 = vpop.f32.mrb[0].mxu0
  %v2165 = vadd.f32 %v336, %v2164
  %v2166 = vpop.f32.mrb[0].mxu0
  %2167 = vdwg.mxu0
  %v2168 = vsel %vm526, %v2130, -inf
  %2169 = vmax.xlane.f32.xlu0 %v2168
  %v2170 = vpop.xlane.xlu0 %2169
  %v2171 = vsel %vm526, %v2135, -inf
  %2172 = vmax.xlane.f32.xlu0 %v2171
  %v2173 = vpop.xlane.xlu0 %2172
  %v2174 = vsel %vm526, %v2140, -inf
  %2175 = vmax.xlane.f32.xlu0 %v2174
  %v2176 = vpop.xlane.xlu0 %2175
  %v2177 = vsel %vm526, %v2145, -inf
  %2178 = vmax.xlane.f32.xlu0 %v2177
  %v2179 = vpop.xlane.xlu0 %2178
  %v2180 = vsel %vm526, %v2150, -inf
  %2181 = vmax.xlane.f32.xlu0 %v2180
  %v2182 = vpop.xlane.xlu0 %2181
  %v2183 = vsel %vm526, %v2155, -inf
  %2184 = vmax.xlane.f32.xlu0 %v2183
  %v2185 = vpop.xlane.xlu0 %2184
  %v2186 = vsel %vm526, %v2160, -inf
  %2187 = vmax.xlane.f32.xlu0 %v2186
  %v2188 = vpop.xlane.xlu0 %2187
  %v2189 = vsel %vm526, %v2165, -inf
  %2190 = vmax.xlane.f32.xlu0 %v2189
  %v2191 = vpop.xlane.xlu0 %2190
  %v2192 = vsub.f32 %v2130, %v2170
  %v2193 = vsub.f32 %v2135, %v2173
  %v2194 = vsub.f32 %v2140, %v2176
  %v2195 = vsub.f32 %v2145, %v2179
  %v2196 = vsub.f32 %v2150, %v2182
  %v2197 = vsub.f32 %v2155, %v2185
  %v2198 = vsub.f32 %v2160, %v2188
  %v2199 = vsub.f32 %v2165, %v2191
  %v2200 = vmul.f32 %v2192, 1.442695
  %v2201 = vpow.pop %v2200
  %v2202 = vmul.f32 %v2193, 1.442695
  %v2203 = vpow.pop %v2202
  %v2204 = vmul.f32 %v2194, 1.442695
  %v2205 = vpow.pop %v2204
  %v2206 = vmul.f32 %v2195, 1.442695
  %v2207 = vpow.pop %v2206
  %v2208 = vmul.f32 %v2196, 1.442695
  %v2209 = vpow.pop %v2208
  %v2210 = vmul.f32 %v2197, 1.442695
  %v2211 = vpow.pop %v2210
  %v2212 = vmul.f32 %v2198, 1.442695
  %v2213 = vpow.pop %v2212
  %v2214 = vmul.f32 %v2199, 1.442695
  %v2215 = vpow.pop %v2214
  %v2216 = vsel %vm526, %v2201, 0.0
  %2217 = vadd.xlane.f32.xlu0 %v2216
  %v2218 = vpop.xlane.xlu0 %2217
  %v2219 = vsel %vm526, %v2203, 0.0
  %2220 = vadd.xlane.f32.xlu0 %v2219
  %v2221 = vpop.xlane.xlu0 %2220
  %v2222 = vsel %vm526, %v2205, 0.0
  %2223 = vadd.xlane.f32.xlu0 %v2222
  %v2224 = vpop.xlane.xlu0 %2223
  %v2225 = vsel %vm526, %v2207, 0.0
  %2226 = vadd.xlane.f32.xlu0 %v2225
  %v2227 = vpop.xlane.xlu0 %2226
  %v2228 = vsel %vm526, %v2209, 0.0
  %2229 = vadd.xlane.f32.xlu0 %v2228
  %v2230 = vpop.xlane.xlu0 %2229
  %v2231 = vsel %vm526, %v2211, 0.0
  %2232 = vadd.xlane.f32.xlu0 %v2231
  %v2233 = vpop.xlane.xlu0 %2232
  %v2234 = vsel %vm526, %v2213, 0.0
  %2235 = vadd.xlane.f32.xlu0 %v2234
  %v2236 = vpop.xlane.xlu0 %2235
  %v2237 = vsel %vm526, %v2215, 0.0
  %2238 = vadd.xlane.f32.xlu0 %v2237
  %v2239 = vpop.xlane.xlu0 %2238
  %2240 = vrot.lane.b32.xlu0 %v283, 40
  %v2241 = vpop.permute.xlu0 %2240
  %2242 = vrot.lane.b32.xlu0 %v288, 40
  %v2243 = vpop.permute.xlu0 %2242
  %2244 = vrot.lane.b32.xlu0 %v293, 40
  %v2245 = vpop.permute.xlu0 %2244
  %2246 = vrot.lane.b32.xlu0 %v298, 40
  %v2247 = vpop.permute.xlu0 %2246
  %2248 = vrot.lane.b32.xlu0 %v303, 40
  %v2249 = vpop.permute.xlu0 %2248
  %2250 = vrot.lane.b32.xlu0 %v308, 40
  %v2251 = vpop.permute.xlu0 %2250
  %2252 = vrot.lane.b32.xlu0 %v313, 40
  %v2253 = vpop.permute.xlu0 %2252
  %2254 = vrot.lane.b32.xlu0 %v318, 40
  %v2255 = vpop.permute.xlu0 %2254
  %v2265 = vsel %vm526, %v2201, 0
  %v2268 = vsel %vm526, %v2203, 0
  %v2271 = vsel %vm526, %v2205, 0
  %v2274 = vsel %vm526, %v2207, 0
  %v2277 = vsel %vm526, %v2209, 0
  %v2280 = vsel %vm526, %v2211, 0
  %v2283 = vsel %vm526, %v2213, 0
  %v2286 = vsel %vm526, %v2215, 0
  %2288 = vmatprep.subr.mxu0 0.0
  %2289 = vmatpush1.msra.mxu0 %v2241
  %2290 = vmatprep.subr.mxu0 0.0
  %2291 = vmatpush1.msra.mxu0 %v2243
  %2292 = vmatprep.subr.mxu0 0.0
  %2293 = vmatpush1.msra.mxu0 %v2245
  %2294 = vmatprep.subr.mxu0 0.0
  %2295 = vmatpush1.msra.mxu0 %v2247
  %2296 = vmatprep.subr.mxu0 0.0
  %2297 = vmatpush1.msra.mxu0 %v2249
  %2298 = vmatprep.subr.mxu0 0.0
  %2299 = vmatpush1.msra.mxu0 %v2251
  %2300 = vmatprep.subr.mxu0 0.0
  %2301 = vmatpush1.msra.mxu0 %v2253
  %2302 = vmatprep.subr.mxu0 0.0
  %2303 = vmatpush1.msra.mxu0 %v2255
  %2304 = vmatprep.subr.mxu0 0.0
  %2305 = vmatpush1.msra.mxu0 0.0
  %2306 = vmatprep.subr.mxu0 0.0
  %2307 = vmatpush1.msra.mxu0 0.0
  %2308 = vmatprep.subr.mxu0 0.0
  %2309 = vmatpush1.msra.mxu0 0.0
  %2310 = vmatprep.subr.mxu0 0.0
  %2311 = vmatpush1.msra.mxu0 0.0
  %2312 = vmatprep.subr.mxu0 0.0
  %2313 = vmatpush1.msra.mxu0 0.0
  %2314 = vmatprep.subr.mxu0 0.0
  %2315 = vmatpush1.msra.mxu0 0.0
  %2316 = vmatprep.subr.mxu0 0.0
  %2317 = vmatpush1.msra.mxu0 0.0
  %2318 = vmatprep.subr.mxu0 0.0
  %2319 = vmatpush1.msra.mxu0 0.0
  %2320 = vmatprep.subr.mxu0 0.0
  %2321 = vmatpush1.msra.mxu0 0.0
  %2322 = vmatprep.subr.mxu0 0.0
  %2323 = vmatpush1.msra.mxu0 0.0
  %2324 = vmatprep.subr.mxu0 0.0
  %2325 = vmatpush1.msra.mxu0 0.0
  %2326 = vmatprep.subr.mxu0 0.0
  %2327 = vmatpush1.msra.mxu0 0.0
  %2328 = vmatprep.subr.mxu0 0.0
  %2329 = vmatpush1.msra.mxu0 0.0
  %2330 = vmatprep.subr.mxu0 0.0
  %2331 = vmatpush1.msra.mxu0 0.0
  %2332 = vmatprep.subr.mxu0 0.0
  %2333 = vmatpush1.msra.mxu0 0.0
  %2334 = vmatprep.subr.mxu0 0.0
  %2335 = vmatpush1.msra.mxu0 0.0
  %2336 = vmatprep.subr.mxu0 0.0
  %2337 = vmatpush1.msra.mxu0 0.0
  %2338 = vmatprep.subr.mxu0 0.0
  %2339 = vmatpush1.msra.mxu0 0.0
  %2340 = vmatprep.subr.mxu0 0.0
  %2341 = vmatpush1.msra.mxu0 0.0
  %2342 = vmatprep.subr.mxu0 0.0
  %2343 = vmatpush1.msra.mxu0 0.0
  %2344 = vmatprep.subr.mxu0 0.0
  %2345 = vmatpush1.msra.mxu0 0.0
  %2346 = vmatprep.subr.mxu0 0.0
  %2347 = vmatpush1.msra.mxu0 0.0
  %2348 = vmatprep.subr.mxu0 0.0
  %2349 = vmatpush1.msra.mxu0 0.0
  %2350 = vmatprep.subr.mxu0 0.0
  %2351 = vmatpush1.msra.mxu0 0.0
  %2352 = vmatprep.mubr.f32.mxu0 0.0
  %2353 = vmatmul.mubr.f32.gmra.mrb[0].mxu0 %v2265
  %v2354 = vpop.f32.mrb[0].mxu0
  %v2355 = vadd.f32 0.0, %v2354
  %v2356 = vpop.f32.mrb[0].mxu0
  %2357 = vmatprep.mubr.f32.mxu0 0.0
  %2358 = vmatmul.mubr.f32.gmra.mrb[0].mxu0 %v2268
  %v2359 = vpop.f32.mrb[0].mxu0
  %v2360 = vadd.f32 0.0, %v2359
  %v2361 = vpop.f32.mrb[0].mxu0
  %2362 = vmatprep.mubr.f32.mxu0 0.0
  %2363 = vmatmul.mubr.f32.gmra.mrb[0].mxu0 %v2271
  %v2364 = vpop.f32.mrb[0].mxu0
  %v2365 = vadd.f32 0.0, %v2364
  %v2366 = vpop.f32.mrb[0].mxu0
  %2367 = vmatprep.mubr.f32.mxu0 0.0
  %2368 = vmatmul.mubr.f32.gmra.mrb[0].mxu0 %v2274
  %v2369 = vpop.f32.mrb[0].mxu0
  %v2370 = vadd.f32 0.0, %v2369
  %v2371 = vpop.f32.mrb[0].mxu0
  %2372 = vmatprep.mubr.f32.mxu0 0.0
  %2373 = vmatmul.mubr.f32.gmra.mrb[0].mxu0 %v2277
  %v2374 = vpop.f32.mrb[0].mxu0
  %v2375 = vadd.f32 0.0, %v2374
  %v2376 = vpop.f32.mrb[0].mxu0
  %2377 = vmatprep.mubr.f32.mxu0 0.0
  %2378 = vmatmul.mubr.f32.gmra.mrb[0].mxu0 %v2280
  %v2379 = vpop.f32.mrb[0].mxu0
  %v2380 = vadd.f32 0.0, %v2379
  %v2381 = vpop.f32.mrb[0].mxu0
  %2382 = vmatprep.mubr.f32.mxu0 0.0
  %2383 = vmatmul.mubr.f32.gmra.mrb[0].mxu0 %v2283
  %v2384 = vpop.f32.mrb[0].mxu0
  %v2385 = vadd.f32 0.0, %v2384
  %v2386 = vpop.f32.mrb[0].mxu0
  %2387 = vmatprep.mubr.f32.mxu0 0.0
  %2388 = vmatmul.mubr.f32.gmra.mrb[0].mxu0 %v2286
  %v2389 = vpop.f32.mrb[0].mxu0
  %v2390 = vadd.f32 0.0, %v2389
  %v2391 = vpop.f32.mrb[0].mxu0
  %2392 = vdwg.mxu0
  %v2393 = vrcp.pop %v2218
  %v2394 = vmul.f32 %v2355, %v2393
  %v2395 = vrcp.pop %v2221
  %v2396 = vmul.f32 %v2360, %v2395
  %v2397 = vrcp.pop %v2224
  %v2398 = vmul.f32 %v2365, %v2397
  %v2399 = vrcp.pop %v2227
  %v2400 = vmul.f32 %v2370, %v2399
  %v2401 = vrcp.pop %v2230
  %v2402 = vmul.f32 %v2375, %v2401
  %v2403 = vrcp.pop %v2233
  %v2404 = vmul.f32 %v2380, %v2403
  %v2405 = vrcp.pop %v2236
  %v2406 = vmul.f32 %v2385, %v2405
  %v2407 = vrcp.pop %v2239
  %v2408 = vmul.f32 %v2390, %v2407
  %v2410 = vsel %vm380, %v2394, 0
  %v2413 = vsel %vm380, %v2396, 0
  %v2416 = vsel %vm380, %v2398, 0
  %v2419 = vsel %vm380, %v2400, 0
  %v2422 = vsel %vm380, %v2402, 0
  %v2425 = vsel %vm380, %v2404, 0
  %v2428 = vsel %vm380, %v2406, 0
  %v2431 = vsel %vm380, %v2408, 0
  %2433 = vmatprep.subr.mxu0 0.0
  %2434 = vmatpush1.msra.mxu0 %v340
  %2435 = vmatprep.subr.mxu0 0.0
  %2436 = vmatpush1.msra.mxu0 0.0
  %2437 = vmatprep.subr.mxu0 0.0
  %2438 = vmatpush1.msra.mxu0 0.0
  %2439 = vmatprep.subr.mxu0 0.0
  %2440 = vmatpush1.msra.mxu0 0.0
  %2441 = vmatprep.subr.mxu0 0.0
  %2442 = vmatpush1.msra.mxu0 0.0
  %2443 = vmatprep.subr.mxu0 0.0
  %2444 = vmatpush1.msra.mxu0 0.0
  %2445 = vmatprep.subr.mxu0 0.0
  %2446 = vmatpush1.msra.mxu0 0.0
  %2447 = vmatprep.subr.mxu0 0.0
  %2448 = vmatpush1.msra.mxu0 0.0
  %2449 = vmatprep.subr.mxu0 0.0
  %2450 = vmatpush1.msra.mxu0 0.0
  %2451 = vmatprep.subr.mxu0 0.0
  %2452 = vmatpush1.msra.mxu0 0.0
  %2453 = vmatprep.subr.mxu0 0.0
  %2454 = vmatpush1.msra.mxu0 0.0
  %2455 = vmatprep.subr.mxu0 0.0
  %2456 = vmatpush1.msra.mxu0 0.0
  %2457 = vmatprep.subr.mxu0 0.0
  %2458 = vmatpush1.msra.mxu0 0.0
  %2459 = vmatprep.subr.mxu0 0.0
  %2460 = vmatpush1.msra.mxu0 0.0
  %2461 = vmatprep.subr.mxu0 0.0
  %2462 = vmatpush1.msra.mxu0 0.0
  %2463 = vmatprep.subr.mxu0 0.0
  %2464 = vmatpush1.msra.mxu0 0.0
  %2465 = vmatprep.subr.mxu0 0.0
  %2466 = vmatpush1.msra.mxu0 0.0
  %2467 = vmatprep.subr.mxu0 0.0
  %2468 = vmatpush1.msra.mxu0 0.0
  %2469 = vmatprep.subr.mxu0 0.0
  %2470 = vmatpush1.msra.mxu0 0.0
  %2471 = vmatprep.subr.mxu0 0.0
  %2472 = vmatpush1.msra.mxu0 0.0
  %2473 = vmatprep.subr.mxu0 0.0
  %2474 = vmatpush1.msra.mxu0 0.0
  %2475 = vmatprep.subr.mxu0 0.0
  %2476 = vmatpush1.msra.mxu0 0.0
  %2477 = vmatprep.subr.mxu0 0.0
  %2478 = vmatpush1.msra.mxu0 0.0
  %2479 = vmatprep.subr.mxu0 0.0
  %2480 = vmatpush1.msra.mxu0 0.0
  %2481 = vmatprep.subr.mxu0 0.0
  %2482 = vmatpush1.msra.mxu0 0.0
  %2483 = vmatprep.subr.mxu0 0.0
  %2484 = vmatpush1.msra.mxu0 0.0
  %2485 = vmatprep.subr.mxu0 0.0
  %2486 = vmatpush1.msra.mxu0 0.0
  %2487 = vmatprep.subr.mxu0 0.0
  %2488 = vmatpush1.msra.mxu0 0.0
  %2489 = vmatprep.subr.mxu0 0.0
  %2490 = vmatpush1.msra.mxu0 0.0
  %2491 = vmatprep.subr.mxu0 0.0
  %2492 = vmatpush1.msra.mxu0 0.0
  %2493 = vmatprep.subr.mxu0 0.0
  %2494 = vmatpush1.msra.mxu0 0.0
  %2495 = vmatprep.subr.mxu0 0.0
  %2496 = vmatpush1.msra.mxu0 0.0
  %2497 = vmatprep.mubr.f32.mxu0 0.0
  %2498 = vmatmul.mubr.f32.gmra.mrb[0].mxu0 %v2410
  %v2499 = vpop.f32.mrb[0].mxu0
  %v2500 = vadd.f32 0.0, %v2499
  %v2501 = vpop.f32.mrb[0].mxu0
  %2502 = vmatprep.mubr.f32.mxu0 0.0
  %2503 = vmatmul.mubr.f32.gmra.mrb[0].mxu0 %v2413
  %v2504 = vpop.f32.mrb[0].mxu0
  %v2505 = vadd.f32 0.0, %v2504
  %v2506 = vpop.f32.mrb[0].mxu0
  %2507 = vmatprep.mubr.f32.mxu0 0.0
  %2508 = vmatmul.mubr.f32.gmra.mrb[0].mxu0 %v2416
  %v2509 = vpop.f32.mrb[0].mxu0
  %v2510 = vadd.f32 0.0, %v2509
  %v2511 = vpop.f32.mrb[0].mxu0
  %2512 = vmatprep.mubr.f32.mxu0 0.0
  %2513 = vmatmul.mubr.f32.gmra.mrb[0].mxu0 %v2419
  %v2514 = vpop.f32.mrb[0].mxu0
  %v2515 = vadd.f32 0.0, %v2514
  %v2516 = vpop.f32.mrb[0].mxu0
  %2517 = vmatprep.mubr.f32.mxu0 0.0
  %2518 = vmatmul.mubr.f32.gmra.mrb[0].mxu0 %v2422
  %v2519 = vpop.f32.mrb[0].mxu0
  %v2520 = vadd.f32 0.0, %v2519
  %v2521 = vpop.f32.mrb[0].mxu0
  %2522 = vmatprep.mubr.f32.mxu0 0.0
  %2523 = vmatmul.mubr.f32.gmra.mrb[0].mxu0 %v2425
  %v2524 = vpop.f32.mrb[0].mxu0
  %v2525 = vadd.f32 0.0, %v2524
  %v2526 = vpop.f32.mrb[0].mxu0
  %2527 = vmatprep.mubr.f32.mxu0 0.0
  %2528 = vmatmul.mubr.f32.gmra.mrb[0].mxu0 %v2428
  %v2529 = vpop.f32.mrb[0].mxu0
  %v2530 = vadd.f32 0.0, %v2529
  %v2531 = vpop.f32.mrb[0].mxu0
  %2532 = vmatprep.mubr.f32.mxu0 0.0
  %2533 = vmatmul.mubr.f32.gmra.mrb[0].mxu0 %v2431
  %v2534 = vpop.f32.mrb[0].mxu0
  %v2535 = vadd.f32 0.0, %v2534
  %v2536 = vpop.f32.mrb[0].mxu0
  %2537 = vdwg.mxu0
  %v2538 = vadd.f32 %v1991, %v2500
  %v2539 = vadd.f32 %v1992, %v2505
  %v2540 = vadd.f32 %v1993, %v2510
  %v2541 = vadd.f32 %v1994, %v2515
  %v2542 = vadd.f32 %v1995, %v2520
  %v2543 = vadd.f32 %v1996, %v2525
  %v2544 = vadd.f32 %v1997, %v2530
  %v2545 = vadd.f32 %v1998, %v2535
  %v2546 = vld [vmem:[%s7] sm:$0x1]
  %v2547 = vld [vmem:[%s8] sm:$0x1]
  %v2548 = vsel %vm54, %v2538, 0.0
  %2549 = vadd.xlane.f32.xlu0 %v2548
  %v2550 = vpop.xlane.xlu0 %2549
  %v2551 = vsel %vm54, %v2539, 0.0
  %2552 = vadd.xlane.f32.xlu0 %v2551
  %v2553 = vpop.xlane.xlu0 %2552
  %v2554 = vsel %vm54, %v2540, 0.0
  %2555 = vadd.xlane.f32.xlu0 %v2554
  %v2556 = vpop.xlane.xlu0 %2555
  %v2557 = vsel %vm54, %v2541, 0.0
  %2558 = vadd.xlane.f32.xlu0 %v2557
  %v2559 = vpop.xlane.xlu0 %2558
  %v2560 = vsel %vm54, %v2542, 0.0
  %2561 = vadd.xlane.f32.xlu0 %v2560
  %v2562 = vpop.xlane.xlu0 %2561
  %v2563 = vsel %vm54, %v2543, 0.0
  %2564 = vadd.xlane.f32.xlu0 %v2563
  %v2565 = vpop.xlane.xlu0 %2564
  %v2566 = vsel %vm54, %v2544, 0.0
  %2567 = vadd.xlane.f32.xlu0 %v2566
  %v2568 = vpop.xlane.xlu0 %2567
  %v2569 = vsel %vm54, %v2545, 0.0
  %2570 = vadd.xlane.f32.xlu0 %v2569
  %v2571 = vpop.xlane.xlu0 %2570
  %v2572 = vmul.f32 %v2550, %v79
  %v2573 = vmul.f32 %v2553, %v79
  %v2574 = vmul.f32 %v2556, %v79
  %v2575 = vmul.f32 %v2559, %v79
  %v2576 = vmul.f32 %v2562, %v79
  %v2577 = vmul.f32 %v2565, %v79
  %v2578 = vmul.f32 %v2568, %v79
  %v2579 = vmul.f32 %v2571, %v79
  %v2580 = vsub.f32 %v2538, %v2572
  %v2581 = vsub.f32 %v2539, %v2573
  %v2582 = vsub.f32 %v2540, %v2574
  %v2583 = vsub.f32 %v2541, %v2575
  %v2584 = vsub.f32 %v2542, %v2576
  %v2585 = vsub.f32 %v2543, %v2577
  %v2586 = vsub.f32 %v2544, %v2578
  %v2587 = vsub.f32 %v2545, %v2579
  %v2588 = vmul.f32 %v2580, %v2580
  %v2589 = vmul.f32 %v2581, %v2581
  %v2590 = vmul.f32 %v2582, %v2582
  %v2591 = vmul.f32 %v2583, %v2583
  %v2592 = vmul.f32 %v2584, %v2584
  %v2593 = vmul.f32 %v2585, %v2585
  %v2594 = vmul.f32 %v2586, %v2586
  %v2595 = vmul.f32 %v2587, %v2587
  %v2596 = vsel %vm54, %v2588, 0.0
  %2597 = vadd.xlane.f32.xlu0 %v2596
  %v2598 = vpop.xlane.xlu0 %2597
  %v2599 = vsel %vm54, %v2589, 0.0
  %2600 = vadd.xlane.f32.xlu0 %v2599
  %v2601 = vpop.xlane.xlu0 %2600
  %v2602 = vsel %vm54, %v2590, 0.0
  %2603 = vadd.xlane.f32.xlu0 %v2602
  %v2604 = vpop.xlane.xlu0 %2603
  %v2605 = vsel %vm54, %v2591, 0.0
  %2606 = vadd.xlane.f32.xlu0 %v2605
  %v2607 = vpop.xlane.xlu0 %2606
  %v2608 = vsel %vm54, %v2592, 0.0
  %2609 = vadd.xlane.f32.xlu0 %v2608
  %v2610 = vpop.xlane.xlu0 %2609
  %v2611 = vsel %vm54, %v2593, 0.0
  %2612 = vadd.xlane.f32.xlu0 %v2611
  %v2613 = vpop.xlane.xlu0 %2612
  %v2614 = vsel %vm54, %v2594, 0.0
  %2615 = vadd.xlane.f32.xlu0 %v2614
  %v2616 = vpop.xlane.xlu0 %2615
  %v2617 = vsel %vm54, %v2595, 0.0
  %2618 = vadd.xlane.f32.xlu0 %v2617
  %v2619 = vpop.xlane.xlu0 %2618
  %v2620 = vmul.f32 %v2598, %v79
  %v2621 = vmul.f32 %v2601, %v79
  %v2622 = vmul.f32 %v2604, %v79
  %v2623 = vmul.f32 %v2607, %v79
  %v2624 = vmul.f32 %v2610, %v79
  %v2625 = vmul.f32 %v2613, %v79
  %v2626 = vmul.f32 %v2616, %v79
  %v2627 = vmul.f32 %v2619, %v79
  %v2628 = vadd.f32 %v2620, 1e-05
  %v2629 = vadd.f32 %v2621, 1e-05
  %v2630 = vadd.f32 %v2622, 1e-05
  %v2631 = vadd.f32 %v2623, 1e-05
  %v2632 = vadd.f32 %v2624, 1e-05
  %v2633 = vadd.f32 %v2625, 1e-05
  %v2634 = vadd.f32 %v2626, 1e-05
  %v2635 = vadd.f32 %v2627, 1e-05
  %v2636 = vrsqrt.pop %v2628
  %v2637 = vrsqrt.pop %v2629
  %v2638 = vrsqrt.pop %v2630
  %v2639 = vrsqrt.pop %v2631
  %v2640 = vrsqrt.pop %v2632
  %v2641 = vrsqrt.pop %v2633
  %v2642 = vrsqrt.pop %v2634
  %v2643 = vrsqrt.pop %v2635
  %v2644 = vmul.f32 %v2580, %v2636
  %v2645 = vmul.f32 %v2581, %v2637
  %v2646 = vmul.f32 %v2582, %v2638
  %v2647 = vmul.f32 %v2583, %v2639
  %v2648 = vmul.f32 %v2584, %v2640
  %v2649 = vmul.f32 %v2585, %v2641
  %v2650 = vmul.f32 %v2586, %v2642
  %v2651 = vmul.f32 %v2587, %v2643
  %v2653 = vlaneseq
  %v2654 = vshrl.u32 %v2653, 7
  %v2655 = vsub.s32 0, %v2654
  %v2656 = vrot.slane %v2546, %v2655
  %v2658 = vmul.f32 %v2644, %v2656
  %v2659 = vmul.f32 %v2645, %v2656
  %v2660 = vmul.f32 %v2646, %v2656
  %v2661 = vmul.f32 %v2647, %v2656
  %v2662 = vmul.f32 %v2648, %v2656
  %v2663 = vmul.f32 %v2649, %v2656
  %v2664 = vmul.f32 %v2650, %v2656
  %v2665 = vmul.f32 %v2651, %v2656
  %v2667 = vlaneseq
  %v2668 = vshrl.u32 %v2667, 7
  %v2669 = vsub.s32 0, %v2668
  %v2670 = vrot.slane %v2547, %v2669
  %v2672 = vadd.f32 %v2658, %v2670
  %v2673 = vadd.f32 %v2659, %v2670
  %v2674 = vadd.f32 %v2660, %v2670
  %v2675 = vadd.f32 %v2661, %v2670
  %v2676 = vadd.f32 %v2662, %v2670
  %v2677 = vadd.f32 %v2663, %v2670
  %v2678 = vadd.f32 %v2664, %v2670
  %v2679 = vadd.f32 %v2665, %v2670
  %v2680 = vld [vmem:[%s9] sm:$0xff]
  %v2681 = vld [vmem:[%s9 + $0x8] sm:$0xff]
  %v2682 = vld [vmem:[%s9 + $0x10] sm:$0xff]
  %v2683 = vld [vmem:[%s9 + $0x18] sm:$0xff]
  %v2684 = vld [vmem:[%s10] sm:$0x1]
  %v2686 = vlaneseq
  %v2687 = vshrl.u32 %v2686, 7
  %v2688 = vsub.s32 0, %v2687
  %v2689 = vrot.slane %v2684, %v2688
  %v2692 = vsel %vm54, %v2672, 0
  %v2695 = vsel %vm54, %v2673, 0
  %v2698 = vsel %vm54, %v2674, 0
  %v2701 = vsel %vm54, %v2675, 0
  %v2704 = vsel %vm54, %v2676, 0
  %v2707 = vsel %vm54, %v2677, 0
  %v2710 = vsel %vm54, %v2678, 0
  %v2713 = vsel %vm54, %v2679, 0
  %2715 = vmatprep.subr.mxu0 0.0
  %2716 = vmatpush1.msra.mxu0 %v2680
  %2717 = vmatprep.subr.mxu0 0.0
  %2718 = vmatpush1.msra.mxu0 %v2681
  %2719 = vmatprep.subr.mxu0 0.0
  %2720 = vmatpush1.msra.mxu0 %v2682
  %2721 = vmatprep.subr.mxu0 0.0
  %2722 = vmatpush1.msra.mxu0 %v2683
  %2723 = vmatprep.subr.mxu0 0.0
  %2724 = vmatpush1.msra.mxu0 0.0
  %2725 = vmatprep.subr.mxu0 0.0
  %2726 = vmatpush1.msra.mxu0 0.0
  %2727 = vmatprep.subr.mxu0 0.0
  %2728 = vmatpush1.msra.mxu0 0.0
  %2729 = vmatprep.subr.mxu0 0.0
  %2730 = vmatpush1.msra.mxu0 0.0
  %2731 = vmatprep.subr.mxu0 0.0
  %2732 = vmatpush1.msra.mxu0 0.0
  %2733 = vmatprep.subr.mxu0 0.0
  %2734 = vmatpush1.msra.mxu0 0.0
  %2735 = vmatprep.subr.mxu0 0.0
  %2736 = vmatpush1.msra.mxu0 0.0
  %2737 = vmatprep.subr.mxu0 0.0
  %2738 = vmatpush1.msra.mxu0 0.0
  %2739 = vmatprep.subr.mxu0 0.0
  %2740 = vmatpush1.msra.mxu0 0.0
  %2741 = vmatprep.subr.mxu0 0.0
  %2742 = vmatpush1.msra.mxu0 0.0
  %2743 = vmatprep.subr.mxu0 0.0
  %2744 = vmatpush1.msra.mxu0 0.0
  %2745 = vmatprep.subr.mxu0 0.0
  %2746 = vmatpush1.msra.mxu0 0.0
  %2747 = vmatprep.subr.mxu0 0.0
  %2748 = vmatpush1.msra.mxu0 0.0
  %2749 = vmatprep.subr.mxu0 0.0
  %2750 = vmatpush1.msra.mxu0 0.0
  %2751 = vmatprep.subr.mxu0 0.0
  %2752 = vmatpush1.msra.mxu0 0.0
  %2753 = vmatprep.subr.mxu0 0.0
  %2754 = vmatpush1.msra.mxu0 0.0
  %2755 = vmatprep.subr.mxu0 0.0
  %2756 = vmatpush1.msra.mxu0 0.0
  %2757 = vmatprep.subr.mxu0 0.0
  %2758 = vmatpush1.msra.mxu0 0.0
  %2759 = vmatprep.subr.mxu0 0.0
  %2760 = vmatpush1.msra.mxu0 0.0
  %2761 = vmatprep.subr.mxu0 0.0
  %2762 = vmatpush1.msra.mxu0 0.0
  %2763 = vmatprep.subr.mxu0 0.0
  %2764 = vmatpush1.msra.mxu0 0.0
  %2765 = vmatprep.subr.mxu0 0.0
  %2766 = vmatpush1.msra.mxu0 0.0
  %2767 = vmatprep.subr.mxu0 0.0
  %2768 = vmatpush1.msra.mxu0 0.0
  %2769 = vmatprep.subr.mxu0 0.0
  %2770 = vmatpush1.msra.mxu0 0.0
  %2771 = vmatprep.subr.mxu0 0.0
  %2772 = vmatpush1.msra.mxu0 0.0
  %2773 = vmatprep.subr.mxu0 0.0
  %2774 = vmatpush1.msra.mxu0 0.0
  %2775 = vmatprep.subr.mxu0 0.0
  %2776 = vmatpush1.msra.mxu0 0.0
  %2777 = vmatprep.subr.mxu0 0.0
  %2778 = vmatpush1.msra.mxu0 0.0
  %2779 = vmatprep.mubr.f32.mxu0 0.0
  %2780 = vmatmul.mubr.f32.gmra.mrb[0].mxu0 %v2692
  %v2781 = vpop.f32.mrb[0].mxu0
  %v2782 = vadd.f32 %v2689, %v2781
  %v2783 = vpop.f32.mrb[0].mxu0
  %2784 = vmatprep.mubr.f32.mxu0 0.0
  %2785 = vmatmul.mubr.f32.gmra.mrb[0].mxu0 %v2695
  %v2786 = vpop.f32.mrb[0].mxu0
  %v2787 = vadd.f32 %v2689, %v2786
  %v2788 = vpop.f32.mrb[0].mxu0
  %2789 = vmatprep.mubr.f32.mxu0 0.0
  %2790 = vmatmul.mubr.f32.gmra.mrb[0].mxu0 %v2698
  %v2791 = vpop.f32.mrb[0].mxu0
  %v2792 = vadd.f32 %v2689, %v2791
  %v2793 = vpop.f32.mrb[0].mxu0
  %2794 = vmatprep.mubr.f32.mxu0 0.0
  %2795 = vmatmul.mubr.f32.gmra.mrb[0].mxu0 %v2701
  %v2796 = vpop.f32.mrb[0].mxu0
  %v2797 = vadd.f32 %v2689, %v2796
  %v2798 = vpop.f32.mrb[0].mxu0
  %2799 = vmatprep.mubr.f32.mxu0 0.0
  %2800 = vmatmul.mubr.f32.gmra.mrb[0].mxu0 %v2704
  %v2801 = vpop.f32.mrb[0].mxu0
  %v2802 = vadd.f32 %v2689, %v2801
  %v2803 = vpop.f32.mrb[0].mxu0
  %2804 = vmatprep.mubr.f32.mxu0 0.0
  %2805 = vmatmul.mubr.f32.gmra.mrb[0].mxu0 %v2707
  %v2806 = vpop.f32.mrb[0].mxu0
  %v2807 = vadd.f32 %v2689, %v2806
  %v2808 = vpop.f32.mrb[0].mxu0
  %2809 = vmatprep.mubr.f32.mxu0 0.0
  %2810 = vmatmul.mubr.f32.gmra.mrb[0].mxu0 %v2710
  %v2811 = vpop.f32.mrb[0].mxu0
  %v2812 = vadd.f32 %v2689, %v2811
  %v2813 = vpop.f32.mrb[0].mxu0
  %2814 = vmatprep.mubr.f32.mxu0 0.0
  %2815 = vmatmul.mubr.f32.gmra.mrb[0].mxu0 %v2713
  %v2816 = vpop.f32.mrb[0].mxu0
  %v2817 = vadd.f32 %v2689, %v2816
  %v2818 = vpop.f32.mrb[0].mxu0
  %2819 = vdwg.mxu0
  %v2820 = vmax.f32 %v2782, 0.0
  %v2821 = vmax.f32 %v2787, 0.0
  %v2822 = vmax.f32 %v2792, 0.0
  %v2823 = vmax.f32 %v2797, 0.0
  %v2824 = vmax.f32 %v2802, 0.0
  %v2825 = vmax.f32 %v2807, 0.0
  %v2826 = vmax.f32 %v2812, 0.0
  %v2827 = vmax.f32 %v2817, 0.0
  %v2828 = vld [vmem:[%s11] sm:$0xff]
  %v2829 = vld [vmem:[%s11 + $0x8] sm:$0xff]
  %v2830 = vld [vmem:[%s11 + $0x10] sm:$0xff]
  %v2831 = vld [vmem:[%s11 + $0x18] sm:$0xff]
  %v2832 = vld [vmem:[%s11 + $0x20] sm:$0xff]
  %v2833 = vld [vmem:[%s11 + $0x28] sm:$0xff]
  %v2834 = vld [vmem:[%s11 + $0x30] sm:$0xff]
  %v2835 = vld [vmem:[%s11 + $0x38] sm:$0xff]
  %v2836 = vld [vmem:[%s11 + $0x40] sm:$0xff]
  %v2837 = vld [vmem:[%s11 + $0x48] sm:$0xff]
  %v2838 = vld [vmem:[%s11 + $0x50] sm:$0xff]
  %v2839 = vld [vmem:[%s11 + $0x58] sm:$0xff]
  %v2840 = vld [vmem:[%s11 + $0x60] sm:$0xff]
  %v2841 = vld [vmem:[%s11 + $0x68] sm:$0xff]
  %v2842 = vld [vmem:[%s11 + $0x70] sm:$0xff]
  %v2843 = vld [vmem:[%s11 + $0x78] sm:$0xff]
  %v2844 = vld [vmem:[%s12] sm:$0x1]
  %v2846 = vlaneseq
  %v2847 = vshrl.u32 %v2846, 7
  %v2848 = vsub.s32 0, %v2847
  %v2849 = vrot.slane %v2844, %v2848
  %2851 = vmatprep.subr.mxu0 0.0
  %2852 = vmatpush1.msra.mxu0 %v2828
  %2853 = vmatprep.subr.mxu0 0.0
  %2854 = vmatpush1.msra.mxu0 %v2829
  %2855 = vmatprep.subr.mxu0 0.0
  %2856 = vmatpush1.msra.mxu0 %v2830
  %2857 = vmatprep.subr.mxu0 0.0
  %2858 = vmatpush1.msra.mxu0 %v2831
  %2859 = vmatprep.subr.mxu0 0.0
  %2860 = vmatpush1.msra.mxu0 %v2832
  %2861 = vmatprep.subr.mxu0 0.0
  %2862 = vmatpush1.msra.mxu0 %v2833
  %2863 = vmatprep.subr.mxu0 0.0
  %2864 = vmatpush1.msra.mxu0 %v2834
  %2865 = vmatprep.subr.mxu0 0.0
  %2866 = vmatpush1.msra.mxu0 %v2835
  %2867 = vmatprep.subr.mxu0 0.0
  %2868 = vmatpush1.msra.mxu0 %v2836
  %2869 = vmatprep.subr.mxu0 0.0
  %2870 = vmatpush1.msra.mxu0 %v2837
  %2871 = vmatprep.subr.mxu0 0.0
  %2872 = vmatpush1.msra.mxu0 %v2838
  %2873 = vmatprep.subr.mxu0 0.0
  %2874 = vmatpush1.msra.mxu0 %v2839
  %2875 = vmatprep.subr.mxu0 0.0
  %2876 = vmatpush1.msra.mxu0 %v2840
  %2877 = vmatprep.subr.mxu0 0.0
  %2878 = vmatpush1.msra.mxu0 %v2841
  %2879 = vmatprep.subr.mxu0 0.0
  %2880 = vmatpush1.msra.mxu0 %v2842
  %2881 = vmatprep.subr.mxu0 0.0
  %2882 = vmatpush1.msra.mxu0 %v2843
  %2883 = vmatprep.subr.mxu0 0.0
  %2884 = vmatpush1.msra.mxu0 0.0
  %2885 = vmatprep.subr.mxu0 0.0
  %2886 = vmatpush1.msra.mxu0 0.0
  %2887 = vmatprep.subr.mxu0 0.0
  %2888 = vmatpush1.msra.mxu0 0.0
  %2889 = vmatprep.subr.mxu0 0.0
  %2890 = vmatpush1.msra.mxu0 0.0
  %2891 = vmatprep.subr.mxu0 0.0
  %2892 = vmatpush1.msra.mxu0 0.0
  %2893 = vmatprep.subr.mxu0 0.0
  %2894 = vmatpush1.msra.mxu0 0.0
  %2895 = vmatprep.subr.mxu0 0.0
  %2896 = vmatpush1.msra.mxu0 0.0
  %2897 = vmatprep.subr.mxu0 0.0
  %2898 = vmatpush1.msra.mxu0 0.0
  %2899 = vmatprep.subr.mxu0 0.0
  %2900 = vmatpush1.msra.mxu0 0.0
  %2901 = vmatprep.subr.mxu0 0.0
  %2902 = vmatpush1.msra.mxu0 0.0
  %2903 = vmatprep.subr.mxu0 0.0
  %2904 = vmatpush1.msra.mxu0 0.0
  %2905 = vmatprep.subr.mxu0 0.0
  %2906 = vmatpush1.msra.mxu0 0.0
  %2907 = vmatprep.subr.mxu0 0.0
  %2908 = vmatpush1.msra.mxu0 0.0
  %2909 = vmatprep.subr.mxu0 0.0
  %2910 = vmatpush1.msra.mxu0 0.0
  %2911 = vmatprep.subr.mxu0 0.0
  %2912 = vmatpush1.msra.mxu0 0.0
  %2913 = vmatprep.subr.mxu0 0.0
  %2914 = vmatpush1.msra.mxu0 0.0
  %2915 = vmatprep.mubr.f32.mxu0 0.0
  %2916 = vmatmul.mubr.f32.gmra.mrb[0].mxu0 %v2820
  %v2917 = vpop.f32.mrb[0].mxu0
  %v2918 = vadd.f32 %v2849, %v2917
  %v2919 = vpop.f32.mrb[0].mxu0
  %2920 = vmatprep.mubr.f32.mxu0 0.0
  %2921 = vmatmul.mubr.f32.gmra.mrb[0].mxu0 %v2821
  %v2922 = vpop.f32.mrb[0].mxu0
  %v2923 = vadd.f32 %v2849, %v2922
  %v2924 = vpop.f32.mrb[0].mxu0
  %2925 = vmatprep.mubr.f32.mxu0 0.0
  %2926 = vmatmul.mubr.f32.gmra.mrb[0].mxu0 %v2822
  %v2927 = vpop.f32.mrb[0].mxu0
  %v2928 = vadd.f32 %v2849, %v2927
  %v2929 = vpop.f32.mrb[0].mxu0
  %2930 = vmatprep.mubr.f32.mxu0 0.0
  %2931 = vmatmul.mubr.f32.gmra.mrb[0].mxu0 %v2823
  %v2932 = vpop.f32.mrb[0].mxu0
  %v2933 = vadd.f32 %v2849, %v2932
  %v2934 = vpop.f32.mrb[0].mxu0
  %2935 = vmatprep.mubr.f32.mxu0 0.0
  %2936 = vmatmul.mubr.f32.gmra.mrb[0].mxu0 %v2824
  %v2937 = vpop.f32.mrb[0].mxu0
  %v2938 = vadd.f32 %v2849, %v2937
  %v2939 = vpop.f32.mrb[0].mxu0
  %2940 = vmatprep.mubr.f32.mxu0 0.0
  %2941 = vmatmul.mubr.f32.gmra.mrb[0].mxu0 %v2825
  %v2942 = vpop.f32.mrb[0].mxu0
  %v2943 = vadd.f32 %v2849, %v2942
  %v2944 = vpop.f32.mrb[0].mxu0
  %2945 = vmatprep.mubr.f32.mxu0 0.0
  %2946 = vmatmul.mubr.f32.gmra.mrb[0].mxu0 %v2826
  %v2947 = vpop.f32.mrb[0].mxu0
  %v2948 = vadd.f32 %v2849, %v2947
  %v2949 = vpop.f32.mrb[0].mxu0
  %2950 = vmatprep.mubr.f32.mxu0 0.0
  %2951 = vmatmul.mubr.f32.gmra.mrb[0].mxu0 %v2827
  %v2952 = vpop.f32.mrb[0].mxu0
  %v2953 = vadd.f32 %v2849, %v2952
  %v2954 = vpop.f32.mrb[0].mxu0
  %2955 = vdwg.mxu0
  %v2956 = vadd.f32 %v2672, %v2918
  %v2957 = vadd.f32 %v2673, %v2923
  %v2958 = vadd.f32 %v2674, %v2928
  %v2959 = vadd.f32 %v2675, %v2933
  %v2960 = vadd.f32 %v2676, %v2938
  %v2961 = vadd.f32 %v2677, %v2943
  %v2962 = vadd.f32 %v2678, %v2948
  %v2963 = vadd.f32 %v2679, %v2953
  %2964 = vst.msk [vmem:[%s13] sm:$0xff] %vm54, %v2956
  %2965 = vst.msk [vmem:[%s13 + $0x8] sm:$0xff] %vm54, %v2957
  %2966 = vst.msk [vmem:[%s13 + $0x10] sm:$0xff] %vm54, %v2958
  %2967 = vst.msk [vmem:[%s13 + $0x18] sm:$0xff] %vm54, %v2959
  %2968 = vst.msk [vmem:[%s13 + $0x20] sm:$0xff] %vm54, %v2960
  %2969 = vst.msk [vmem:[%s13 + $0x28] sm:$0xff] %vm54, %v2961
  %2970 = vst.msk [vmem:[%s13 + $0x30] sm:$0xff] %vm54, %v2962
  %2971 = vst.msk [vmem:[%s13 + $0x38] sm:$0xff] %vm54, %v2963
  // Predicated region
  $region54: #{tpu_custom_call.1} parent=0 // pred_check
    _
  $region55: #{tpu_custom_call.1} parent=0 // pred_check_branch
    %2973 = sbr.rel (0) target = $region57
  $region56: #{tpu_custom_call.1} parent=0 // pred_region
    _
  $region57: #{tpu_custom_call.1} parent=0 // pred_fallthru
    _
  // Predicated region
  $region58: #{tpu_custom_call.1} parent=0 // pred_check
    _
  $region59: #{tpu_custom_call.1} parent=0 // pred_check_branch
    %2975 = sbr.rel (0) target = $region61
  $region60: #{tpu_custom_call.1} parent=0 // pred_region
    _
  $region61: #{tpu_custom_call.1} parent=0 // pred_fallthru
    _

</llo_original>
